<compile_context>
chip_gen: v5e
topology: v5e:2x2
jax: 0.10.0
libtpu: 0.0.40
codegen_flags: <defaults>
</compile_context>

<pallas_src>
import functools

import jax
import jax.numpy as jnp
from jax.experimental import pallas as pl
from jax.experimental.pallas import tpu as pltpu


def attention_kernel(x_ref, wf_ref, bf_ref, wse_ref, bse_ref, mask_ref,
                     o_ref, stack_ref, *, H, W, C):
    """One batch element per grid step, CHW-flat layout (lane axis = H*W).

    x_ref    : (1, C, H*W)   f32 input (NCHW with spatial flattened)
    wf_ref   : (C, 9*C)      bf16 fused weights, tap k = 3x3 position (k//3, k%3);
                             the center tap (k=4) already contains W1 + W3_center
    bf_ref   : (C, 1)        f32 fused bias (b1 + b3)
    wse_ref  : (C, C)        f32 SE 1x1 conv weight (out, in)
    bse_ref  : (C, 1)        f32 SE bias
    mask_ref : (8, 1, H*W)   f32 validity masks for the 8 off-center taps
                             (implements Conv2d's zero padding)
    o_ref    : (1, C, H*W)   f32 output
    stack_ref: (9*C, H*W)    bf16 scratch: stacked taps (RHS of fused matmul)
    """
    HW = H * W
    x = x_ref[0]                                     # (C, HW) f32

    # ---- SE branch first (only tiny tensors stay live during tap build) ----
    pooled = jnp.mean(x, axis=1, keepdims=True)      # (C, 1) f32
    gate = jax.nn.sigmoid(
        jnp.dot(wse_ref[...], pooled, preferred_element_type=jnp.float32)
        + bse_ref[...])                              # (C, 1) f32

    # ---- Build the stacked RHS for the fused (1x1 + 3x3) conv matmul ----
    # Center tap (k=4): un-shifted x, always valid -> no roll, no mask.
    stack_ref[pl.ds(4 * C, C), :] = x.astype(jnp.bfloat16)

    # Off-center taps: lane roll on the flattened spatial axis (XLU) plus a
    # precomputed boundary mask (kills both the zero-padding positions and
    # the roll wrap-around).
    j = 0
    for k in range(9):
        if k == 4:
            continue
        dy, dx = k // 3 - 1, k % 3 - 1
        off = dy * W + dx                            # flat spatial offset
        shifted = pltpu.roll(x, (-off) % HW, 1)      # shifted[i] = x[i + off]
        tap = shifted * mask_ref[j]                  # (C, HW) * (1, HW)
        stack_ref[pl.ds(k * C, C), :] = tap.astype(jnp.bfloat16)
        j += 1

    # ---- One lane-dense MXU matmul: (C,9C) x (9C,HW) -> (C,HW), f32 acc ----
    conv = jnp.dot(wf_ref[...], stack_ref[...],
                   preferred_element_type=jnp.float32)

    # ---- Fuse: conv + bias + SE-gated x, then ReLU (all f32 VPU) ----
    y = jnp.maximum(conv + bf_ref[...] + gate * x, 0.0)
    o_ref[0] = y.astype(o_ref.dtype)


def _prepare_params(params, H, W):
    """PyTorch-layout conv params -> fused kernel operands (tiny, done once)."""
    w1, b1, w3, b3, wse, bse = params
    C = w1.shape[0]
    HW = H * W

    # Fused weight (C_out, 9*C_in): tap k is the 3x3 slice w3[:, :, k//3, k%3];
    # the 1x1 conv is folded into the center tap (k=4).
    taps = [w3[:, :, k // 3, k % 3] for k in range(9)]
    taps[4] = taps[4] + w1
    w_fused = jnp.stack(taps, axis=1).reshape(C, 9 * C).astype(jnp.bfloat16)
    b_fused = (b1 + b3).reshape(C, 1).astype(jnp.float32)

    # Validity masks of the 8 off-center taps over the flattened spatial axis.
    hh = jnp.arange(H)[:, None]
    ww = jnp.arange(W)[None, :]
    masks = []
    for k in range(9):
        if k == 4:
            continue
        dy, dx = k // 3 - 1, k % 3 - 1
        m = (hh + dy >= 0) & (hh + dy < H) & (ww + dx >= 0) & (ww + dx < W)
        masks.append(m.reshape(HW))
    masks = jnp.stack(masks, axis=0).reshape(8, 1, HW).astype(jnp.float32)

    return (w_fused, b_fused, wse.astype(jnp.float32),
            bse.reshape(C, 1).astype(jnp.float32), masks)


def attention_forward(x_nchw, params):
    """x_nchw: (B, C, H, W) float32. Returns (B, C, H, W).

    No host-side transposes or padding: the kernel consumes the natural NCHW
    layout with the spatial dims flattened (free reshape)."""
    B, C, H, W = x_nchw.shape
    HW = H * W

    w_fused, b_fused, wse, bse, masks = _prepare_params(params, H, W)
    x_flat = x_nchw.reshape(B, C, HW)                # contiguous -> free

    kern = functools.partial(attention_kernel, H=H, W=W, C=C)

    out = pl.pallas_call(
        kern,
        out_shape=jax.ShapeDtypeStruct((B, C, HW), x_nchw.dtype),
        grid_spec=pltpu.PrefetchScalarGridSpec(
            num_scalar_prefetch=0,
            grid=(B,),                               # B>=2 keeps both v7x TCs busy
            in_specs=[
                pl.BlockSpec((1, C, HW), lambda b: (b, 0, 0)),      # x
                pl.BlockSpec((C, 9 * C), lambda b: (0, 0)),         # fused W (bf16)
                pl.BlockSpec((C, 1), lambda b: (0, 0)),             # fused bias
                pl.BlockSpec((C, C), lambda b: (0, 0)),             # SE weight
                pl.BlockSpec((C, 1), lambda b: (0, 0)),             # SE bias
                pl.BlockSpec((8, 1, HW), lambda b: (0, 0, 0)),      # tap masks
            ],
            out_specs=pl.BlockSpec((1, C, HW), lambda b: (b, 0, 0)),
            scratch_shapes=[pltpu.VMEM((9 * C, HW), jnp.bfloat16)],
        ),
        compiler_params=pltpu.CompilerParams(
            dimension_semantics=("parallel",)),
    )(x_flat, w_fused, b_fused, wse, bse, masks)

    return out.reshape(B, C, H, W)


def reference_forward(x, params):
    """Pure-jnp f32 reference with PyTorch Conv2d (cross-correlation) semantics."""
    w1, b1, w3, b3, wse, bse = params
    B, C, H, W = x.shape
    x1 = jnp.einsum("oi,bihw->bohw", w1, x) + b1[None, :, None, None]
    xp = jnp.pad(x, ((0, 0), (0, 0), (1, 1), (1, 1)))
    x2 = jnp.zeros_like(x1)
    for ky in range(3):
        for kx in range(3):
            x2 = x2 + jnp.einsum("oi,bihw->bohw", w3[:, :, ky, kx],
                                 xp[:, :, ky:ky + H, kx:kx + W])
    x2 = x2 + b3[None, :, None, None]
    pooled = jnp.mean(x, axis=(2, 3))                          # (B, C)
    gate = jax.nn.sigmoid(pooled @ wse.T + bse[None, :])       # (B, C)
    x3 = x * gate[:, :, None, None]
    return jnp.maximum(x1 + x2 + x3, 0.0)


def init_params(key, C):
    """Params in PyTorch Conv2d layout: w (out, in[, kh, kw]), b (out,)."""
    ks = jax.random.split(key, 6)
    s1 = 1.0 / jnp.sqrt(1.0 * C)          # ~ Conv2d default U(-1/sqrt(fan_in), .)
    s3 = 1.0 / jnp.sqrt(9.0 * C)
    w1 = jax.random.uniform(ks[0], (C, C), jnp.float32, -s1, s1)
    b1 = jax.random.uniform(ks[1], (C,), jnp.float32, -s1, s1)
    w3 = jax.random.uniform(ks[2], (C, C, 3, 3), jnp.float32, -s3, s3)
    b3 = jax.random.uniform(ks[3], (C,), jnp.float32, -s3, s3)
    wse = jax.random.uniform(ks[4], (C, C), jnp.float32, -s1, s1)
    bse = jax.random.uniform(ks[5], (C,), jnp.float32, -s1, s1)
    return (w1, b1, w3, b3, wse, bse)


if __name__ == "__main__":
    key = jax.random.PRNGKey(0)
    kx, kp = jax.random.split(key)

    B, C, H, W = 2, 32, 16, 16                        # small synthetic shapes
    x = jax.random.normal(kx, (B, C, H, W), jnp.float32)
    params = init_params(kp, C)

    y = jax.block_until_ready(attention_forward(x, params))
    y_ref = reference_forward(x, params)

    assert y.shape == (B, C, H, W)
    # bf16 MXU inputs (f32 accumulation) vs. a pure-f32 reference -> tolerance
    # loosened accordingly; SE gate / bias / ReLU are exact f32 in both.
    max_err = float(jnp.max(jnp.abs(y - y_ref)))
    assert jnp.allclose(y, y_ref, atol=5e-2, rtol=2e-2), (
        "mismatch vs reference, max|diff|=%e" % max_err)

    print("KERNEL_OK")
</pallas_src>

<mosaic_0001>
module attributes {stable_mosaic.version = 11 : i64} {
  func.func @attention_kernel(%arg0: i32, %arg1: memref<1x32x256xf32, #tpu.memory_space<vmem>>, %arg2: memref<32x288xbf16, #tpu.memory_space<vmem>>, %arg3: memref<32x1xf32, #tpu.memory_space<vmem>>, %arg4: memref<32x32xf32, #tpu.memory_space<vmem>>, %arg5: memref<32x1xf32, #tpu.memory_space<vmem>>, %arg6: memref<8x1x256xf32, #tpu.memory_space<vmem>>, %arg7: memref<1x32x256xf32, #tpu.memory_space<vmem>>, %arg8: memref<288x256xbf16, #tpu.memory_space<vmem>>) attributes {dimension_semantics = [#tpu.dimension_semantics<parallel>], iteration_bounds = array<i64: 2>, scalar_prefetch = 0 : i64, scratch_operands = 1 : i64, tpu.core_type = #tpu.core_type<tc>, window_params = [{transform_indices = @transform_0, window_bounds = array<i64: 1, 32, 256>}, {pipeline_mode = #tpu.pipeline_mode<synchronous>, transform_indices = @transform_1, window_bounds = array<i64: 32, 288>}, {pipeline_mode = #tpu.pipeline_mode<synchronous>, transform_indices = @transform_2, window_bounds = array<i64: 32, 1>}, {pipeline_mode = #tpu.pipeline_mode<synchronous>, transform_indices = @transform_3, window_bounds = array<i64: 32, 32>}, {pipeline_mode = #tpu.pipeline_mode<synchronous>, transform_indices = @transform_4, window_bounds = array<i64: 32, 1>}, {pipeline_mode = #tpu.pipeline_mode<synchronous>, transform_indices = @transform_5, window_bounds = array<i64: 8, 1, 256>}, {transform_indices = @transform_6, window_bounds = array<i64: 1, 32, 256>}]} {
    %c0 = arith.constant 0 : index
    %c0_0 = arith.constant 0 : index
    %c0_1 = arith.constant 0 : index
    %0 = vector.load %arg1[%c0, %c0_0, %c0_1] : memref<1x32x256xf32, #tpu.memory_space<vmem>>, vector<1x32x256xf32>
    %1 = vector.shape_cast %0 : vector<1x32x256xf32> to vector<32x256xf32>
    %cst = arith.constant dense<0.000000e+00> : vector<32xf32>
    %2 = vector.multi_reduction <add>, %1, %cst [1] : vector<32x256xf32> to vector<32xf32>
    %3 = vector.shape_cast %2 : vector<32xf32> to vector<32x1xf32>
    %cst_2 = arith.constant 2.560000e+02 : f32
    %4 = vector.broadcast %cst_2 : f32 to vector<32x1xf32>
    %5 = arith.divf %3, %4 : vector<32x1xf32>
    %c0_3 = arith.constant 0 : index
    %c0_4 = arith.constant 0 : index
    %6 = vector.load %arg4[%c0_3, %c0_4] : memref<32x32xf32, #tpu.memory_space<vmem>>, vector<32x32xf32>
    %cst_5 = arith.constant dense<0.000000e+00> : vector<32x1xf32>
    %7 = tpu.matmul %6, %5, %cst_5 {dimension_numbers = #tpu.dot_dimension_numbers<[1], [0], [0], [1], [0, 0, 1, 1], [], []>} : vector<32x32xf32>, vector<32x1xf32>, vector<32x1xf32> -> vector<32x1xf32>
    %c0_6 = arith.constant 0 : index
    %c0_7 = arith.constant 0 : index
    %8 = vector.load %arg5[%c0_6, %c0_7] : memref<32x1xf32, #tpu.memory_space<vmem>>, vector<32x1xf32>
    %9 = arith.addf %7, %8 : vector<32x1xf32>
    %10 = arith.negf %9 : vector<32x1xf32>
    %11 = math.exp %10 : vector<32x1xf32>
    %cst_8 = arith.constant 1.000000e+00 : f32
    %12 = vector.broadcast %cst_8 : f32 to vector<32x1xf32>
    %13 = arith.addf %12, %11 : vector<32x1xf32>
    %14 = arith.divf %12, %13 : vector<32x1xf32>
    %15 = arith.truncf %1 : vector<32x256xf32> to vector<32x256xbf16>
    %c128 = arith.constant 128 : index
    %c0_9 = arith.constant 0 : index
    %16 = vector.load %arg8[%c128, %c0_9] : memref<288x256xbf16, #tpu.memory_space<vmem>>, vector<32x256xbf16>
    tpu.vector_store %arg8[%c128, %c0_9], %15 {strides = array<i32>} : memref<288x256xbf16, #tpu.memory_space<vmem>>, vector<32x256xbf16>,
    %c17_i32 = arith.constant 17 : i32
    %17 = tpu.dynamic_rotate %1 by %c17_i32 dim 1 : vector<32x256xf32>, i32 -> vector<32x256xf32>
    %c0_10 = arith.constant 0 : index
    %c0_11 = arith.constant 0 : index
    %c0_12 = arith.constant 0 : index
    %18 = vector.load %arg6[%c0_10, %c0_11, %c0_12] : memref<8x1x256xf32, #tpu.memory_space<vmem>>, vector<1x1x256xf32>
    %19 = vector.shape_cast %18 : vector<1x1x256xf32> to vector<1x256xf32>
    %20 = vector.broadcast %19 : vector<1x256xf32> to vector<32x256xf32>
    %21 = arith.mulf %17, %20 : vector<32x256xf32>
    %22 = arith.truncf %21 : vector<32x256xf32> to vector<32x256xbf16>
    %c0_13 = arith.constant 0 : index
    %c0_14 = arith.constant 0 : index
    %23 = vector.load %arg8[%c0_13, %c0_14] : memref<288x256xbf16, #tpu.memory_space<vmem>>, vector<32x256xbf16>
    tpu.vector_store %arg8[%c0_13, %c0_14], %22 {strides = array<i32>} : memref<288x256xbf16, #tpu.memory_space<vmem>>, vector<32x256xbf16>,
    %c16_i32 = arith.constant 16 : i32
    %24 = tpu.dynamic_rotate %1 by %c16_i32 dim 1 : vector<32x256xf32>, i32 -> vector<32x256xf32>
    %c1 = arith.constant 1 : index
    %c0_15 = arith.constant 0 : index
    %c0_16 = arith.constant 0 : index
    %25 = vector.load %arg6[%c1, %c0_15, %c0_16] : memref<8x1x256xf32, #tpu.memory_space<vmem>>, vector<1x1x256xf32>
    %26 = vector.shape_cast %25 : vector<1x1x256xf32> to vector<1x256xf32>
    %27 = vector.broadcast %26 : vector<1x256xf32> to vector<32x256xf32>
    %28 = arith.mulf %24, %27 : vector<32x256xf32>
    %29 = arith.truncf %28 : vector<32x256xf32> to vector<32x256xbf16>
    %c32 = arith.constant 32 : index
    %c0_17 = arith.constant 0 : index
    %30 = vector.load %arg8[%c32, %c0_17] : memref<288x256xbf16, #tpu.memory_space<vmem>>, vector<32x256xbf16>
    tpu.vector_store %arg8[%c32, %c0_17], %29 {strides = array<i32>} : memref<288x256xbf16, #tpu.memory_space<vmem>>, vector<32x256xbf16>,
    %c15_i32 = arith.constant 15 : i32
    %31 = tpu.dynamic_rotate %1 by %c15_i32 dim 1 : vector<32x256xf32>, i32 -> vector<32x256xf32>
    %c2 = arith.constant 2 : index
    %c0_18 = arith.constant 0 : index
    %c0_19 = arith.constant 0 : index
    %32 = vector.load %arg6[%c2, %c0_18, %c0_19] : memref<8x1x256xf32, #tpu.memory_space<vmem>>, vector<1x1x256xf32>
    %33 = vector.shape_cast %32 : vector<1x1x256xf32> to vector<1x256xf32>
    %34 = vector.broadcast %33 : vector<1x256xf32> to vector<32x256xf32>
    %35 = arith.mulf %31, %34 : vector<32x256xf32>
    %36 = arith.truncf %35 : vector<32x256xf32> to vector<32x256xbf16>
    %c64 = arith.constant 64 : index
    %c0_20 = arith.constant 0 : index
    %37 = vector.load %arg8[%c64, %c0_20] : memref<288x256xbf16, #tpu.memory_space<vmem>>, vector<32x256xbf16>
    tpu.vector_store %arg8[%c64, %c0_20], %36 {strides = array<i32>} : memref<288x256xbf16, #tpu.memory_space<vmem>>, vector<32x256xbf16>,
    %c1_i32 = arith.constant 1 : i32
    %38 = tpu.dynamic_rotate %1 by %c1_i32 dim 1 : vector<32x256xf32>, i32 -> vector<32x256xf32>
    %c3 = arith.constant 3 : index
    %c0_21 = arith.constant 0 : index
    %c0_22 = arith.constant 0 : index
    %39 = vector.load %arg6[%c3, %c0_21, %c0_22] : memref<8x1x256xf32, #tpu.memory_space<vmem>>, vector<1x1x256xf32>
    %40 = vector.shape_cast %39 : vector<1x1x256xf32> to vector<1x256xf32>
    %41 = vector.broadcast %40 : vector<1x256xf32> to vector<32x256xf32>
    %42 = arith.mulf %38, %41 : vector<32x256xf32>
    %43 = arith.truncf %42 : vector<32x256xf32> to vector<32x256xbf16>
    %c96 = arith.constant 96 : index
    %c0_23 = arith.constant 0 : index
    %44 = vector.load %arg8[%c96, %c0_23] : memref<288x256xbf16, #tpu.memory_space<vmem>>, vector<32x256xbf16>
    tpu.vector_store %arg8[%c96, %c0_23], %43 {strides = array<i32>} : memref<288x256xbf16, #tpu.memory_space<vmem>>, vector<32x256xbf16>,
    %c255_i32 = arith.constant 255 : i32
    %45 = tpu.dynamic_rotate %1 by %c255_i32 dim 1 : vector<32x256xf32>, i32 -> vector<32x256xf32>
    %c4 = arith.constant 4 : index
    %c0_24 = arith.constant 0 : index
    %c0_25 = arith.constant 0 : index
    %46 = vector.load %arg6[%c4, %c0_24, %c0_25] : memref<8x1x256xf32, #tpu.memory_space<vmem>>, vector<1x1x256xf32>
    %47 = vector.shape_cast %46 : vector<1x1x256xf32> to vector<1x256xf32>
    %48 = vector.broadcast %47 : vector<1x256xf32> to vector<32x256xf32>
    %49 = arith.mulf %45, %48 : vector<32x256xf32>
    %50 = arith.truncf %49 : vector<32x256xf32> to vector<32x256xbf16>
    %c160 = arith.constant 160 : index
    %c0_26 = arith.constant 0 : index
    %51 = vector.load %arg8[%c160, %c0_26] : memref<288x256xbf16, #tpu.memory_space<vmem>>, vector<32x256xbf16>
    tpu.vector_store %arg8[%c160, %c0_26], %50 {strides = array<i32>} : memref<288x256xbf16, #tpu.memory_space<vmem>>, vector<32x256xbf16>,
    %c241_i32 = arith.constant 241 : i32
    %52 = tpu.dynamic_rotate %1 by %c241_i32 dim 1 : vector<32x256xf32>, i32 -> vector<32x256xf32>
    %c5 = arith.constant 5 : index
    %c0_27 = arith.constant 0 : index
    %c0_28 = arith.constant 0 : index
    %53 = vector.load %arg6[%c5, %c0_27, %c0_28] : memref<8x1x256xf32, #tpu.memory_space<vmem>>, vector<1x1x256xf32>
    %54 = vector.shape_cast %53 : vector<1x1x256xf32> to vector<1x256xf32>
    %55 = vector.broadcast %54 : vector<1x256xf32> to vector<32x256xf32>
    %56 = arith.mulf %52, %55 : vector<32x256xf32>
    %57 = arith.truncf %56 : vector<32x256xf32> to vector<32x256xbf16>
    %c192 = arith.constant 192 : index
    %c0_29 = arith.constant 0 : index
    %58 = vector.load %arg8[%c192, %c0_29] : memref<288x256xbf16, #tpu.memory_space<vmem>>, vector<32x256xbf16>
    tpu.vector_store %arg8[%c192, %c0_29], %57 {strides = array<i32>} : memref<288x256xbf16, #tpu.memory_space<vmem>>, vector<32x256xbf16>,
    %c240_i32 = arith.constant 240 : i32
    %59 = tpu.dynamic_rotate %1 by %c240_i32 dim 1 : vector<32x256xf32>, i32 -> vector<32x256xf32>
    %c6 = arith.constant 6 : index
    %c0_30 = arith.constant 0 : index
    %c0_31 = arith.constant 0 : index
    %60 = vector.load %arg6[%c6, %c0_30, %c0_31] : memref<8x1x256xf32, #tpu.memory_space<vmem>>, vector<1x1x256xf32>
    %61 = vector.shape_cast %60 : vector<1x1x256xf32> to vector<1x256xf32>
    %62 = vector.broadcast %61 : vector<1x256xf32> to vector<32x256xf32>
    %63 = arith.mulf %59, %62 : vector<32x256xf32>
    %64 = arith.truncf %63 : vector<32x256xf32> to vector<32x256xbf16>
    %c224 = arith.constant 224 : index
    %c0_32 = arith.constant 0 : index
    %65 = vector.load %arg8[%c224, %c0_32] : memref<288x256xbf16, #tpu.memory_space<vmem>>, vector<32x256xbf16>
    tpu.vector_store %arg8[%c224, %c0_32], %64 {strides = array<i32>} : memref<288x256xbf16, #tpu.memory_space<vmem>>, vector<32x256xbf16>,
    %c239_i32 = arith.constant 239 : i32
    %66 = tpu.dynamic_rotate %1 by %c239_i32 dim 1 : vector<32x256xf32>, i32 -> vector<32x256xf32>
    %c7 = arith.constant 7 : index
    %c0_33 = arith.constant 0 : index
    %c0_34 = arith.constant 0 : index
    %67 = vector.load %arg6[%c7, %c0_33, %c0_34] : memref<8x1x256xf32, #tpu.memory_space<vmem>>, vector<1x1x256xf32>
    %68 = vector.shape_cast %67 : vector<1x1x256xf32> to vector<1x256xf32>
    %69 = vector.broadcast %68 : vector<1x256xf32> to vector<32x256xf32>
    %70 = arith.mulf %66, %69 : vector<32x256xf32>
    %71 = arith.truncf %70 : vector<32x256xf32> to vector<32x256xbf16>
    %c256 = arith.constant 256 : index
    %c0_35 = arith.constant 0 : index
    %72 = vector.load %arg8[%c256, %c0_35] : memref<288x256xbf16, #tpu.memory_space<vmem>>, vector<32x256xbf16>
    tpu.vector_store %arg8[%c256, %c0_35], %71 {strides = array<i32>} : memref<288x256xbf16, #tpu.memory_space<vmem>>, vector<32x256xbf16>,
    %c0_36 = arith.constant 0 : index
    %c0_37 = arith.constant 0 : index
    %73 = vector.load %arg2[%c0_36, %c0_37] : memref<32x288xbf16, #tpu.memory_space<vmem>>, vector<32x288xbf16>
    %c0_38 = arith.constant 0 : index
    %c0_39 = arith.constant 0 : index
    %74 = vector.load %arg8[%c0_38, %c0_39] : memref<288x256xbf16, #tpu.memory_space<vmem>>, vector<288x256xbf16>
    %cst_40 = arith.constant dense<0.000000e+00> : vector<32x256xf32>
    %75 = tpu.matmul %73, %74, %cst_40 {dimension_numbers = #tpu.dot_dimension_numbers<[1], [0], [0], [1], [0, 0, 1, 1], [], []>} : vector<32x288xbf16>, vector<288x256xbf16>, vector<32x256xf32> -> vector<32x256xf32>
    %c0_41 = arith.constant 0 : index
    %c0_42 = arith.constant 0 : index
    %76 = vector.load %arg3[%c0_41, %c0_42] : memref<32x1xf32, #tpu.memory_space<vmem>>, vector<32x1xf32>
    %77 = vector.broadcast %76 : vector<32x1xf32> to vector<32x256xf32>
    %78 = arith.addf %75, %77 : vector<32x256xf32>
    %79 = vector.broadcast %14 : vector<32x1xf32> to vector<32x256xf32>
    %80 = arith.mulf %79, %1 : vector<32x256xf32>
    %81 = arith.addf %78, %80 : vector<32x256xf32>
    %cst_43 = arith.constant 0.000000e+00 : f32
    %82 = vector.broadcast %cst_43 : f32 to vector<32x256xf32>
    %83 = arith.maximumf %81, %82 : vector<32x256xf32>
    %c0_44 = arith.constant 0 : index
    %c0_45 = arith.constant 0 : index
    %c0_46 = arith.constant 0 : index
    %84 = vector.load %arg7[%c0_44, %c0_45, %c0_46] : memref<1x32x256xf32, #tpu.memory_space<vmem>>, vector<1x32x256xf32>
    %85 = vector.shape_cast %84 : vector<1x32x256xf32> to vector<32x256xf32>
    %86 = vector.shape_cast %83 : vector<32x256xf32> to vector<1x32x256xf32>
    tpu.vector_store %arg7[%c0_44, %c0_45, %c0_46], %86 {strides = array<i32>} : memref<1x32x256xf32, #tpu.memory_space<vmem>>, vector<1x32x256xf32>,
    return
  }
  func.func @transform_0(%arg0: i32) -> (i32, i32, i32) {
    %c0_i32 = arith.constant 0 : i32
    %c0_i32_0 = arith.constant 0 : i32
    %c0_i32_1 = arith.constant 0 : i32
    return %arg0, %c0_i32, %c0_i32_0 : i32, i32, i32
  }
  func.func @transform_1(%arg0: i32) -> (i32, i32) {
    %c0_i32 = arith.constant 0 : i32
    %c0_i32_0 = arith.constant 0 : i32
    %c0_i32_1 = arith.constant 0 : i32
    return %c0_i32, %c0_i32_0 : i32, i32
  }
  func.func @transform_2(%arg0: i32) -> (i32, i32) {
    %c0_i32 = arith.constant 0 : i32
    %c0_i32_0 = arith.constant 0 : i32
    %c0_i32_1 = arith.constant 0 : i32
    return %c0_i32, %c0_i32_0 : i32, i32
  }
  func.func @transform_3(%arg0: i32) -> (i32, i32) {
    %c0_i32 = arith.constant 0 : i32
    %c0_i32_0 = arith.constant 0 : i32
    %c0_i32_1 = arith.constant 0 : i32
    return %c0_i32, %c0_i32_0 : i32, i32
  }
  func.func @transform_4(%arg0: i32) -> (i32, i32) {
    %c0_i32 = arith.constant 0 : i32
    %c0_i32_0 = arith.constant 0 : i32
    %c0_i32_1 = arith.constant 0 : i32
    return %c0_i32, %c0_i32_0 : i32, i32
  }
  func.func @transform_5(%arg0: i32) -> (i32, i32, i32) {
    %c0_i32 = arith.constant 0 : i32
    %c0_i32_0 = arith.constant 0 : i32
    %c0_i32_1 = arith.constant 0 : i32
    %c0_i32_2 = arith.constant 0 : i32
    return %c0_i32, %c0_i32_0, %c0_i32_1 : i32, i32, i32
  }
  func.func @transform_6(%arg0: i32) -> (i32, i32, i32) {
    %c0_i32 = arith.constant 0 : i32
    %c0_i32_0 = arith.constant 0 : i32
    %c0_i32_1 = arith.constant 0 : i32
    return %arg0, %c0_i32, %c0_i32_0 : i32, i32, i32
  }
}

</mosaic_0001>

<llo_original>
// kernel: tpu_custom_call.1
$region0: #{tpu_custom_call.1}
  #allocation0 [shape = 'u32[]', space=smem, size = 0x4, offset = 0x4, fixed_abs, tag = 'smem constant byte address 0x4 - core index']
  #allocation1 [shape = 'u32[72,128]{1,0:T(1,128)}', space=vmem, size = 0x9000, scoped, tag = 'internal scratch']
  #allocation2 [shape = 'bf16[288,256]{1,0:T(8,128)(2,1)}', space=vmem, size = 0x24000, scoped, tag = 'scratch operand']
  %s0 = inlined_call_operand.hbm [shape: f32[2,32,256], index: 0, kind: input, shape index: {}]
  %s1 = inlined_call_operand.vmem [shape: bf16[32,288], index: 1, kind: input, shape index: {}]
  %s2 = inlined_call_operand.vmem [shape: f32[32,1], index: 2, kind: input, shape index: {}]
  %s3 = inlined_call_operand.hbm [shape: f32[32,32], index: 3, kind: input, shape index: {}]
  %s4 = inlined_call_operand.vmem [shape: f32[32,1], index: 4, kind: input, shape index: {}]
  %s5 = inlined_call_operand.vmem [shape: f32[8,1,256], index: 5, kind: input, shape index: {}]
  %s6 = inlined_call_operand.hbm [shape: f32[2,32,256], index: 6, kind: output, shape index: {}]
  %s7 = sld [smem:[#allocation0]]
  $region65: #{tpu_custom_call.1} parent=0
    _
  %s9 = ssub.s32 1, %s7
  %s10 = scalar_select 0, %s9, %s7
  $region1: #{tpu_custom_call.1} parent=0
    #allocation3 [shape = 'u8[65536]{0}', space=vmem, size = 0x10000, scoped, tag = 'input window, operand 0']
    #allocation4 [shape = 's32[2]{0}', space=sflag, size = 0x8, scoped, tag = 'scoped memory for tpu_custom_call.1']
    #allocation5 [shape = 's32[2]{0}', space=sflag, size = 0x8, scoped, tag = 'scoped memory for tpu_custom_call.1']
    #allocation6 [shape = 'u8[16384]{0}', space=vmem, size = 0x4000, scoped, tag = 'input window, operand 3, single buffered']
    #allocation7 [shape = 's32[1]{0}', space=sflag, size = 0x4, scoped, tag = 'scoped memory for tpu_custom_call.1']
    #allocation8 [shape = 'u8[65536]{0}', space=vmem, size = 0x10000, scoped, tag = 'output window, operand 0']
    %11 = vsyncpa [#allocation4], 0
    %s12 = scalar_lea.sflag [#allocation4], 1
    %13 = vsyncpa %s12, 0
    %14 = vsyncpa [#allocation7], 0
    %15 = vsyncpa [#allocation5], 0
    %s16 = scalar_lea.sflag [#allocation5], 1
    %17 = vsyncpa %s16, 0
    loop: start=0, step=1, limit=4
    $region2: #{tpu_custom_call.1} parent=1 // loop_pre_header
      _
    $region3: #{tpu_custom_call.1} parent=1 // loop_header
      %s19 = sphi 0, %s23
      %p20 = scmp.ge.s32.totalorder %s19, 4
      %s29 = sphi 0, %s31
      %s32 = sphi 0, %s29
      %s33 = sphi 0, %s32
      %s49 = sphi 0, %s33
      %s53 = sphi 0, %s53
      %s55 = sphi 0, %s53
      %s56 = sphi 0, %s55
      %s70 = sphi 0, %s56
      %s74 = sphi 0, %s74
      %s76 = sphi 0, %s74
      %s77 = sphi 0, %s76
      %s91 = sphi 0, %s77
      %s95 = sphi 0, %s95
      %s97 = sphi 0, %s95
      %s98 = sphi 0, %s97
      %s112 = sphi 0, %s98
      %s116 = sphi 0, %s116
      %s118 = sphi 0, %s116
      %s119 = sphi 0, %s118
      %s133 = sphi 0, %s119
      %s137 = sphi 0, %s137
      %s139 = sphi 0, %s137
      %s140 = sphi 0, %s139
      %s154 = sphi 0, %s140
      %s160 = sphi 0, %s162
      %s163 = sphi 0, %s160
      %s164 = sphi 0, %s163
      %s180 = sphi 0, %s164
    $region4: #{tpu_custom_call.1} parent=1 // loop_header_branch
      %22 = sbr.rel (%p20) target = $region8
    $region5: #{tpu_custom_call.1} parent=1 // loop_body
      %s24 = ssub.s32 %s19, 1
      %s25 = ssub.s32 %s19, 2
      %s26 = sadd.s32 %s19, 1
      %s27 = ssub.s32 %s19, %s26
      %p28 = scmp.eq.s32.totalorder %s27, 0
      %s30 = sadd.s32 %s29, 1
      %s31 = scalar_select %p28, %s29, %s30
      %p34 = pneg %p28
      %p35 = scmp.eq.s32.totalorder %s19, 1
      %p36 = por %p34, %p35
      %p37 = scmp.ne.s32.totalorder %s29, %s32
      %p38 = scmp.eq.s32.totalorder %s19, 0
      %p39 = por %p37, %p38
      %p40 = scmp.ne.s32.totalorder %s29, %s32
      %p41 = scmp.eq.s32.totalorder %s24, 1
      %p42 = por %p40, %p41
      %p43 = scmp.ne.s32.totalorder %s32, %s33
      %p44 = scmp.eq.s32.totalorder %s24, 0
      %p45 = por %p43, %p44
      %p46 = scmp.ne.s32.totalorder %s32, %s33
      %p47 = scmp.eq.s32.totalorder %s25, 1
      %p48 = por %p46, %p47
      %p50 = scmp.ne.s32.totalorder %s33, %s49
      %p51 = scmp.eq.s32.totalorder %s25, 0
      %p52 = por %p50, %p51
      %s54 = sadd.s32 %s53, 1
      %p57 = scmp.eq.s32.totalorder %s19, 1
      %p58 = scmp.ne.s32.totalorder %s53, %s55
      %p59 = scmp.eq.s32.totalorder %s19, 0
      %p60 = por %p58, %p59
      %p61 = scmp.ne.s32.totalorder %s53, %s55
      %p62 = scmp.eq.s32.totalorder %s24, 1
      %p63 = por %p61, %p62
      %p64 = scmp.ne.s32.totalorder %s55, %s56
      %p65 = scmp.eq.s32.totalorder %s24, 0
      %p66 = por %p64, %p65
      %p67 = scmp.ne.s32.totalorder %s55, %s56
      %p68 = scmp.eq.s32.totalorder %s25, 1
      %p69 = por %p67, %p68
      %p71 = scmp.ne.s32.totalorder %s56, %s70
      %p72 = scmp.eq.s32.totalorder %s25, 0
      %p73 = por %p71, %p72
      %s75 = sadd.s32 %s74, 1
      %p78 = scmp.eq.s32.totalorder %s19, 1
      %p79 = scmp.ne.s32.totalorder %s74, %s76
      %p80 = scmp.eq.s32.totalorder %s19, 0
      %p81 = por %p79, %p80
      %p82 = scmp.ne.s32.totalorder %s74, %s76
      %p83 = scmp.eq.s32.totalorder %s24, 1
      %p84 = por %p82, %p83
      %p85 = scmp.ne.s32.totalorder %s76, %s77
      %p86 = scmp.eq.s32.totalorder %s24, 0
      %p87 = por %p85, %p86
      %p88 = scmp.ne.s32.totalorder %s76, %s77
      %p89 = scmp.eq.s32.totalorder %s25, 1
      %p90 = por %p88, %p89
      %p92 = scmp.ne.s32.totalorder %s77, %s91
      %p93 = scmp.eq.s32.totalorder %s25, 0
      %p94 = por %p92, %p93
      %s96 = sadd.s32 %s95, 1
      %p99 = scmp.eq.s32.totalorder %s19, 1
      %p100 = scmp.ne.s32.totalorder %s95, %s97
      %p101 = scmp.eq.s32.totalorder %s19, 0
      %p102 = por %p100, %p101
      %p103 = scmp.ne.s32.totalorder %s95, %s97
      %p104 = scmp.eq.s32.totalorder %s24, 1
      %p105 = por %p103, %p104
      %p106 = scmp.ne.s32.totalorder %s97, %s98
      %p107 = scmp.eq.s32.totalorder %s24, 0
      %p108 = por %p106, %p107
      %p109 = scmp.ne.s32.totalorder %s97, %s98
      %p110 = scmp.eq.s32.totalorder %s25, 1
      %p111 = por %p109, %p110
      %p113 = scmp.ne.s32.totalorder %s98, %s112
      %p114 = scmp.eq.s32.totalorder %s25, 0
      %p115 = por %p113, %p114
      %s117 = sadd.s32 %s116, 1
      %p120 = scmp.eq.s32.totalorder %s19, 1
      %p121 = scmp.ne.s32.totalorder %s116, %s118
      %p122 = scmp.eq.s32.totalorder %s19, 0
      %p123 = por %p121, %p122
      %p124 = scmp.ne.s32.totalorder %s116, %s118
      %p125 = scmp.eq.s32.totalorder %s24, 1
      %p126 = por %p124, %p125
      %p127 = scmp.ne.s32.totalorder %s118, %s119
      %p128 = scmp.eq.s32.totalorder %s24, 0
      %p129 = por %p127, %p128
      %p130 = scmp.ne.s32.totalorder %s118, %s119
      %p131 = scmp.eq.s32.totalorder %s25, 1
      %p132 = por %p130, %p131
      %p134 = scmp.ne.s32.totalorder %s119, %s133
      %p135 = scmp.eq.s32.totalorder %s25, 0
      %p136 = por %p134, %p135
      %s138 = sadd.s32 %s137, 1
      %p141 = scmp.eq.s32.totalorder %s19, 1
      %p142 = scmp.ne.s32.totalorder %s137, %s139
      %p143 = scmp.eq.s32.totalorder %s19, 0
      %p144 = por %p142, %p143
      %p145 = scmp.ne.s32.totalorder %s137, %s139
      %p146 = scmp.eq.s32.totalorder %s24, 1
      %p147 = por %p145, %p146
      %p148 = scmp.ne.s32.totalorder %s139, %s140
      %p149 = scmp.eq.s32.totalorder %s24, 0
      %p150 = por %p148, %p149
      %p151 = scmp.ne.s32.totalorder %s139, %s140
      %p152 = scmp.eq.s32.totalorder %s25, 1
      %p153 = por %p151, %p152
      %p155 = scmp.ne.s32.totalorder %s140, %s154
      %p156 = scmp.eq.s32.totalorder %s25, 0
      %p157 = por %p155, %p156
      %s158 = ssub.s32 %s19, %s26
      %p159 = scmp.eq.s32.totalorder %s158, 0
      %s161 = sadd.s32 %s160, 1
      %s162 = scalar_select %p159, %s160, %s161
      %p165 = pneg %p159
      %p166 = scmp.eq.s32.totalorder %s19, 1
      %p167 = por %p165, %p166
      %p168 = scmp.ne.s32.totalorder %s160, %s163
      %p169 = scmp.eq.s32.totalorder %s19, 0
      %p170 = por %p168, %p169
      %p171 = scmp.ne.s32.totalorder %s160, %s163
      %p172 = scmp.eq.s32.totalorder %s24, 1
      %p173 = por %p171, %p172
      %p174 = scmp.ne.s32.totalorder %s163, %s164
      %p175 = scmp.eq.s32.totalorder %s24, 0
      %p176 = por %p174, %p175
      %p177 = scmp.ne.s32.totalorder %s163, %s164
      %p178 = scmp.eq.s32.totalorder %s25, 1
      %p179 = por %p177, %p178
      %p181 = scmp.ne.s32.totalorder %s164, %s180
      %p182 = scmp.eq.s32.totalorder %s25, 0
      %p183 = por %p181, %p182
      %p184 = scmp.le.s32.totalorder 1, %s19
      %p185 = scmp.lt.s32.totalorder %s19, 3
      %p186 = pnand %p184, %p185
      %p187 = pneg %p186
      // Predicated region
      $region9: #{tpu_custom_call.1} parent=5 // pred_check
        _
      $region10: #{tpu_custom_call.1} parent=5 // pred_check_branch
        %189 = sbr.rel (%p186) target = $region12
      $region11: #{tpu_custom_call.1} parent=5 // pred_region
        %s190 = ssub.s32 %s19, 1
        // Predicated region
        $region13: #{tpu_custom_call.1} parent=11 // pred_check
          %p191 = pneg %p66
        $region14: #{tpu_custom_call.1} parent=11 // pred_check_branch
          %193 = sbr.rel (%p191) target = $region16
        $region15: #{tpu_custom_call.1} parent=11 // pred_region
          _
        $region16: #{tpu_custom_call.1} parent=11 // pred_fallthru
          _
        // Predicated region
        $region17: #{tpu_custom_call.1} parent=11 // pred_check
          %p194 = pneg %p87
        $region18: #{tpu_custom_call.1} parent=11 // pred_check_branch
          %196 = sbr.rel (%p194) target = $region20
        $region19: #{tpu_custom_call.1} parent=11 // pred_region
          _
        $region20: #{tpu_custom_call.1} parent=11 // pred_fallthru
          _
        // Predicated region
        $region21: #{tpu_custom_call.1} parent=11 // pred_check
          %p197 = pneg %p108
        $region22: #{tpu_custom_call.1} parent=11 // pred_check_branch
          %199 = sbr.rel (%p197) target = $region24
        $region23: #{tpu_custom_call.1} parent=11 // pred_region
          %201 = vsyncadd [#allocation7], 0
          %s202 = sshll.u32 %s3, 4
          %s203 = int_to_ptr.hbm [resolvable:$true] %s202
          %s204 = sshll.u32 [#allocation6], 4
          %s205 = int_to_ptr.vmem [resolvable:$true] %s204
          %210 = dma.hbm_to_vmem [thread:$0]  %s203, 512, %s205, [#allocation7], 128, 128, 8
        $region24: #{tpu_custom_call.1} parent=11 // pred_fallthru
          _
        // Predicated region
        $region25: #{tpu_custom_call.1} parent=11 // pred_check
          %p211 = pneg %p129
        $region26: #{tpu_custom_call.1} parent=11 // pred_check_branch
          %213 = sbr.rel (%p211) target = $region28
        $region27: #{tpu_custom_call.1} parent=11 // pred_region
          _
        $region28: #{tpu_custom_call.1} parent=11 // pred_fallthru
          _
        // Predicated region
        $region29: #{tpu_custom_call.1} parent=11 // pred_check
          %p214 = pneg %p150
        $region30: #{tpu_custom_call.1} parent=11 // pred_check_branch
          %216 = sbr.rel (%p214) target = $region32
        $region31: #{tpu_custom_call.1} parent=11 // pred_region
          _
        $region32: #{tpu_custom_call.1} parent=11 // pred_fallthru
          _
      $region12: #{tpu_custom_call.1} parent=5 // pred_fallthru
        _
      %p217 = scmp.lt.s32.totalorder %s19, 2
      // Predicated region
      $region33: #{tpu_custom_call.1} parent=5 // pred_check
        %p218 = pneg %p217
      $region34: #{tpu_custom_call.1} parent=5 // pred_check_branch
        %220 = sbr.rel (%p218) target = $region36
      $region35: #{tpu_custom_call.1} parent=5 // pred_region
        // Predicated region
        $region37: #{tpu_custom_call.1} parent=35 // pred_check
          %p221 = pneg %p39
        $region38: #{tpu_custom_call.1} parent=35 // pred_check_branch
          %223 = sbr.rel (%p221) target = $region40
        $region39: #{tpu_custom_call.1} parent=35 // pred_region
          %s224 = sand.u32 %s29, 1
          %s225 = scalar_lea.sflag [#allocation4], %s224
          %s226 = sand.u32 %s29, 1
          %s227 = smul.addr %s226, 64
          %s228 = scalar_lea.vmem [#allocation3], %s227
          %230 = vsyncadd %s225, 0
          %s231 = smul.addr %s19, 8
          %s232 = smul.addr %s231, 8
          %s233 = scalar_lea.hbm %s0, %s232
          %s234 = sshll.u32 %s233, 4
          %s235 = int_to_ptr.hbm [resolvable:$true] %s234
          %s236 = sshll.u32 %s228, 4
          %s237 = int_to_ptr.vmem [resolvable:$true] %s236
          %242 = dma.hbm_to_vmem [thread:$0]  %s235, 1024, %s237, %s225, 256, 256, 16
        $region40: #{tpu_custom_call.1} parent=35 // pred_fallthru
          _
      $region36: #{tpu_custom_call.1} parent=5 // pred_fallthru
        _
      %p243 = scmp.le.s32.totalorder 1, %s19
      %p244 = scmp.lt.s32.totalorder %s19, 3
      %p245 = pnand %p243, %p244
      %p246 = pneg %p245
      // Predicated region
      $region41: #{tpu_custom_call.1} parent=5 // pred_check
        _
      $region42: #{tpu_custom_call.1} parent=5 // pred_check_branch
        %248 = sbr.rel (%p245) target = $region44
      $region43: #{tpu_custom_call.1} parent=5 // pred_region
        %s249 = ssub.s32 %s19, 1
        %s250 = sand.u32 %s32, 1
        %s251 = scalar_lea.sflag [#allocation4], %s250
        %s252 = sand.u32 %s32, 1
        %s253 = smul.addr %s252, 64
        %s254 = scalar_lea.vmem [#allocation3], %s253
        // Predicated region
        $region45: #{tpu_custom_call.1} parent=43 // pred_check
          %p255 = pneg %p45
        $region46: #{tpu_custom_call.1} parent=43 // pred_check_branch
          %257 = sbr.rel (%p255) target = $region48
        $region47: #{tpu_custom_call.1} parent=43 // pred_region
          %259 = dma.done %s251, 1024
        $region48: #{tpu_custom_call.1} parent=43 // pred_fallthru
          _
        // Predicated region
        $region49: #{tpu_custom_call.1} parent=43 // pred_check
          %p260 = pneg %p108
        $region50: #{tpu_custom_call.1} parent=43 // pred_check_branch
          %262 = sbr.rel (%p260) target = $region52
        $region51: #{tpu_custom_call.1} parent=43 // pred_region
          %264 = dma.done [#allocation7], 512
        $region52: #{tpu_custom_call.1} parent=43 // pred_fallthru
          _
        %s265 = sand.u32 %s32, 1
        %s266 = scalar_lea.sflag [#allocation4], %s265
        %s267 = sand.u32 %s32, 1
        %s268 = smul.addr %s267, 64
        %s269 = scalar_lea.vmem [#allocation3], %s268
        %p270 = pneg %p45
        %p271 = pneg %p42
        %p272 = pneg %p66
        %p273 = pneg %p63
        %p274 = pneg %p87
        %p275 = pneg %p84
        %p276 = pneg %p108
        %p277 = pneg %p105
        %p278 = pneg %p129
        %p279 = pneg %p126
        %p280 = pneg %p150
        %p281 = pneg %p147
        %p282 = pneg %p176
        %p283 = pneg %p173
        %s284 = sand.u32 %s163, 1
        %s285 = scalar_lea.sflag [#allocation5], %s284
        %s286 = sand.u32 %s163, 1
        %s287 = smul.addr %s286, 64
        %s288 = scalar_lea.vmem [#allocation8], %s287
        %v290 = vld [vmem:[%s254] sm:$0xff]
        %v291 = vld [vmem:[%s254 + $0x8] sm:$0xff]
        %v292 = vld [vmem:[%s254 + $0x10] sm:$0xff]
        %v293 = vld [vmem:[%s254 + $0x18] sm:$0xff]
        %v294 = vld [vmem:[%s254 + $0x20] sm:$0xff]
        %v295 = vld [vmem:[%s254 + $0x28] sm:$0xff]
        %v296 = vld [vmem:[%s254 + $0x30] sm:$0xff]
        %v297 = vld [vmem:[%s254 + $0x38] sm:$0xff]
        %v298 = vadd.f32 %v290, %v291
        %299 = vadd.xlane.f32.xlu0 %v298
        %v300 = vpop.xlane.xlu0 %299
        %v301 = vadd.f32 %v292, %v293
        %302 = vadd.xlane.f32.xlu0 %v301
        %v303 = vpop.xlane.xlu0 %302
        %v304 = vadd.f32 %v294, %v295
        %305 = vadd.xlane.f32.xlu0 %v304
        %v306 = vpop.xlane.xlu0 %305
        %v307 = vadd.f32 %v296, %v297
        %308 = vadd.xlane.f32.xlu0 %v307
        %v309 = vpop.xlane.xlu0 %308
        %v310 = vrcp.pop 256.0
        %v311 = vmul.f32 256.0, %v310
        %v312 = vsub.f32 1.0, %v311
        %v313 = vmul.f32 %v310, %v312
        %v314 = vadd.f32 %v310, %v313
        %vm315 = vweird.f32 %v310
        %v316 = vsel %vm315, %v310, %v314
        %v317 = vmul.f32 %v300, %v316
        %v318 = vmul.f32 %v303, %v316
        %v319 = vmul.f32 %v306, %v316
        %v320 = vmul.f32 %v309, %v316
        %v321 = vld [vmem:[#allocation6] sm:$0xff]
        %v322 = vld [vmem:[#allocation6 + $0x8] sm:$0xff]
        %v323 = vld [vmem:[#allocation6 + $0x10] sm:$0xff]
        %v324 = vld [vmem:[#allocation6 + $0x18] sm:$0xff]
        %v325 = vld [vmem:[%s4] sm:$0xff]
        %v326 = vld [vmem:[%s4 + $0x8] sm:$0xff]
        %v327 = vld [vmem:[%s4 + $0x10] sm:$0xff]
        %v328 = vld [vmem:[%s4 + $0x18] sm:$0xff]
        %vm329 = vcmask 261120
        %v331 = vsel %vm329, %v321, 0
        %v334 = vsel %vm329, %v322, 0
        %v337 = vsel %vm329, %v323, 0
        %v340 = vsel %vm329, %v324, 0
        %342 = vmatpush.msra.mxu0 0.0
        %343 = vmatpush.msra.mxu0 0.0
        %344 = vmatpush.msra.mxu0 0.0
        %345 = vmatpush.msra.mxu0 0.0
        %346 = vmatpush.msra.mxu0 0.0
        %347 = vmatpush.msra.mxu0 0.0
        %348 = vmatpush.msra.mxu0 0.0
        %349 = vmatpush.msra.mxu0 0.0
        %350 = vmatpush.msra.mxu0 0.0
        %351 = vmatpush.msra.mxu0 0.0
        %352 = vmatpush.msra.mxu0 0.0
        %353 = vmatpush.msra.mxu0 0.0
        %354 = vmatpush.msra.mxu0 %v320
        %355 = vmatpush.msra.mxu0 %v319
        %356 = vmatpush.msra.mxu0 %v318
        %357 = vmatpush.msra.mxu0 %v317
        %358 = vmatmul.f32.gmra.mxu0 %v331
        %v359 = vpop.f32.mrf.mxu0
        %v360 = vadd.f32 %v325, %v359
        %361 = vmatmul.f32.gmra.mxu0 %v334
        %v362 = vpop.f32.mrf.mxu0
        %v363 = vadd.f32 %v326, %v362
        %364 = vmatmul.f32.gmra.mxu0 %v337
        %v365 = vpop.f32.mrf.mxu0
        %v366 = vadd.f32 %v327, %v365
        %367 = vmatmul.f32.gmra.mxu0 %v340
        %v368 = vpop.f32.mrf.mxu0
        %v369 = vadd.f32 %v328, %v368
        %370 = vdwg.mxu0
        %v371 = vxor.u32 %v360, 2147483648
        %v372 = vxor.u32 %v363, 2147483648
        %v373 = vxor.u32 %v366, 2147483648
        %v374 = vxor.u32 %v369, 2147483648
        %v375 = vmul.f32 %v371, 1.442695
        %v376 = vpow.pop %v375
        %v377 = vmul.f32 %v372, 1.442695
        %v378 = vpow.pop %v377
        %v379 = vmul.f32 %v373, 1.442695
        %v380 = vpow.pop %v379
        %v381 = vmul.f32 %v374, 1.442695
        %v382 = vpow.pop %v381
        %v383 = vadd.f32 %v376, 1.0
        %v384 = vadd.f32 %v378, 1.0
        %v385 = vadd.f32 %v380, 1.0
        %v386 = vadd.f32 %v382, 1.0
        %v387 = vrcp.pop %v383
        %v388 = vmul.f32 %v383, %v387
        %v389 = vsub.f32 1.0, %v388
        %v390 = vmul.f32 %v387, %v389
        %v391 = vadd.f32 %v387, %v390
        %vm392 = vweird.f32 %v383
        %vm393 = vweird.f32 %v387
        %vm394 = vmor %vm392, %vm393
        %v395 = vsel %vm394, %v387, %v391
        %v396 = vand.u32 2147483647, %v383
        %vm397 = vcmp.eq.f32.partialorder %v396, 8.507059e+37
        %v398 = vand.u32 %v383, 2147483648
        %v399 = vor.u32 1.1754944e-38, %v398
        %v400 = vsel %vm397, %v399, %v395
        %v401 = vmul.f32 1.0, %v400
        %v402 = vrcp.pop %v384
        %v403 = vmul.f32 %v384, %v402
        %v404 = vsub.f32 1.0, %v403
        %v405 = vmul.f32 %v402, %v404
        %v406 = vadd.f32 %v402, %v405
        %vm407 = vweird.f32 %v384
        %vm408 = vweird.f32 %v402
        %vm409 = vmor %vm407, %vm408
        %v410 = vsel %vm409, %v402, %v406
        %v411 = vand.u32 2147483647, %v384
        %vm412 = vcmp.eq.f32.partialorder %v411, 8.507059e+37
        %v413 = vand.u32 %v384, 2147483648
        %v414 = vor.u32 1.1754944e-38, %v413
        %v415 = vsel %vm412, %v414, %v410
        %v416 = vmul.f32 1.0, %v415
        %v417 = vrcp.pop %v385
        %v418 = vmul.f32 %v385, %v417
        %v419 = vsub.f32 1.0, %v418
        %v420 = vmul.f32 %v417, %v419
        %v421 = vadd.f32 %v417, %v420
        %vm422 = vweird.f32 %v385
        %vm423 = vweird.f32 %v417
        %vm424 = vmor %vm422, %vm423
        %v425 = vsel %vm424, %v417, %v421
        %v426 = vand.u32 2147483647, %v385
        %vm427 = vcmp.eq.f32.partialorder %v426, 8.507059e+37
        %v428 = vand.u32 %v385, 2147483648
        %v429 = vor.u32 1.1754944e-38, %v428
        %v430 = vsel %vm427, %v429, %v425
        %v431 = vmul.f32 1.0, %v430
        %v432 = vrcp.pop %v386
        %v433 = vmul.f32 %v386, %v432
        %v434 = vsub.f32 1.0, %v433
        %v435 = vmul.f32 %v432, %v434
        %v436 = vadd.f32 %v432, %v435
        %vm437 = vweird.f32 %v386
        %vm438 = vweird.f32 %v432
        %vm439 = vmor %vm437, %vm438
        %v440 = vsel %vm439, %v432, %v436
        %v441 = vand.u32 2147483647, %v386
        %vm442 = vcmp.eq.f32.partialorder %v441, 8.507059e+37
        %v443 = vand.u32 %v386, 2147483648
        %v444 = vor.u32 1.1754944e-38, %v443
        %v445 = vsel %vm442, %v444, %v440
        %v446 = vmul.f32 1.0, %v445
        %v447 = vpack.c.bf16 %v291, %v290
        %v448 = vpack.c.bf16 %v293, %v292
        %v449 = vpack.c.bf16 %v295, %v294
        %v450 = vpack.c.bf16 %v297, %v296
        %451 = vst [vmem:[#allocation2 + $0x80] sm:$0xff] %v447
        %452 = vst [vmem:[#allocation2 + $0x88] sm:$0xff] %v448
        %453 = vst [vmem:[#allocation2 + $0x90] sm:$0xff] %v449
        %454 = vst [vmem:[#allocation2 + $0x98] sm:$0xff] %v450
        %455 = vrot.lane.b32.xlu0 %v290, 17
        %v456 = vpop.permute.xlu0 %455
        %457 = vrot.lane.b32.xlu0 %v292, 17
        %v458 = vpop.permute.xlu0 %457
        %459 = vrot.lane.b32.xlu0 %v294, 17
        %v460 = vpop.permute.xlu0 %459
        %461 = vrot.lane.b32.xlu0 %v296, 17
        %v462 = vpop.permute.xlu0 %461
        %463 = vrot.lane.b32.xlu0 %v291, 17
        %v464 = vpop.permute.xlu0 %463
        %465 = vrot.lane.b32.xlu0 %v293, 17
        %v466 = vpop.permute.xlu0 %465
        %467 = vrot.lane.b32.xlu0 %v295, 17
        %v468 = vpop.permute.xlu0 %467
        %469 = vrot.lane.b32.xlu0 %v297, 17
        %v470 = vpop.permute.xlu0 %469
        %v471 = vlaneseq
        %v472 = vand.u32 %v471, 127
        %vm473 = vcmp.lt.s32.totalorder %v472, 17
        %v474 = vsel %vm473, %v456, %v464
        %v475 = vsel %vm473, %v458, %v466
        %v476 = vsel %vm473, %v460, %v468
        %v477 = vsel %vm473, %v462, %v470
        %v478 = vsel %vm473, %v464, %v456
        %v479 = vsel %vm473, %v466, %v458
        %v480 = vsel %vm473, %v468, %v460
        %v481 = vsel %vm473, %v470, %v462
        %v482 = vld [vmem:[%s5] sm:$0x3]
        %v484 = vperm.slane %v482, 0
        %v485 = vperm.slane %v482, 1
        %v488 = vmul.f32 %v478, %v484
        %v489 = vmul.f32 %v474, %v485
        %v490 = vmul.f32 %v479, %v484
        %v491 = vmul.f32 %v475, %v485
        %v492 = vmul.f32 %v480, %v484
        %v493 = vmul.f32 %v476, %v485
        %v494 = vmul.f32 %v481, %v484
        %v495 = vmul.f32 %v477, %v485
        %v496 = vpack.c.bf16 %v489, %v488
        %v497 = vpack.c.bf16 %v491, %v490
        %v498 = vpack.c.bf16 %v493, %v492
        %v499 = vpack.c.bf16 %v495, %v494
        %500 = vst [vmem:[#allocation2] sm:$0xff] %v496
        %501 = vst [vmem:[#allocation2 + $0x8] sm:$0xff] %v497
        %502 = vst [vmem:[#allocation2 + $0x10] sm:$0xff] %v498
        %503 = vst [vmem:[#allocation2 + $0x18] sm:$0xff] %v499
        %504 = vrot.lane.b32.xlu0 %v290, 16
        %v505 = vpop.permute.xlu0 %504
        %506 = vrot.lane.b32.xlu0 %v292, 16
        %v507 = vpop.permute.xlu0 %506
        %508 = vrot.lane.b32.xlu0 %v294, 16
        %v509 = vpop.permute.xlu0 %508
        %510 = vrot.lane.b32.xlu0 %v296, 16
        %v511 = vpop.permute.xlu0 %510
        %512 = vrot.lane.b32.xlu0 %v291, 16
        %v513 = vpop.permute.xlu0 %512
        %514 = vrot.lane.b32.xlu0 %v293, 16
        %v515 = vpop.permute.xlu0 %514
        %516 = vrot.lane.b32.xlu0 %v295, 16
        %v517 = vpop.permute.xlu0 %516
        %518 = vrot.lane.b32.xlu0 %v297, 16
        %v519 = vpop.permute.xlu0 %518
        %vm520 = vcmp.lt.s32.totalorder %v472, 16
        %v521 = vsel %vm520, %v505, %v513
        %v522 = vsel %vm520, %v507, %v515
        %v523 = vsel %vm520, %v509, %v517
        %v524 = vsel %vm520, %v511, %v519
        %v525 = vsel %vm520, %v513, %v505
        %v526 = vsel %vm520, %v515, %v507
        %v527 = vsel %vm520, %v517, %v509
        %v528 = vsel %vm520, %v519, %v511
        %s529 = scalar_lea.vmem %s5, 2
        %v530 = vld [vmem:[%s529] sm:$0x3]
        %v532 = vperm.slane %v530, 0
        %v533 = vperm.slane %v530, 1
        %v536 = vmul.f32 %v525, %v532
        %v537 = vmul.f32 %v521, %v533
        %v538 = vmul.f32 %v526, %v532
        %v539 = vmul.f32 %v522, %v533
        %v540 = vmul.f32 %v527, %v532
        %v541 = vmul.f32 %v523, %v533
        %v542 = vmul.f32 %v528, %v532
        %v543 = vmul.f32 %v524, %v533
        %v544 = vpack.c.bf16 %v537, %v536
        %v545 = vpack.c.bf16 %v539, %v538
        %v546 = vpack.c.bf16 %v541, %v540
        %v547 = vpack.c.bf16 %v543, %v542
        %548 = vst [vmem:[#allocation2 + $0x20] sm:$0xff] %v544
        %549 = vst [vmem:[#allocation2 + $0x28] sm:$0xff] %v545
        %550 = vst [vmem:[#allocation2 + $0x30] sm:$0xff] %v546
        %551 = vst [vmem:[#allocation2 + $0x38] sm:$0xff] %v547
        %552 = vrot.lane.b32.xlu0 %v290, 15
        %v553 = vpop.permute.xlu0 %552
        %554 = vrot.lane.b32.xlu0 %v292, 15
        %v555 = vpop.permute.xlu0 %554
        %556 = vrot.lane.b32.xlu0 %v294, 15
        %v557 = vpop.permute.xlu0 %556
        %558 = vrot.lane.b32.xlu0 %v296, 15
        %v559 = vpop.permute.xlu0 %558
        %560 = vrot.lane.b32.xlu0 %v291, 15
        %v561 = vpop.permute.xlu0 %560
        %562 = vrot.lane.b32.xlu0 %v293, 15
        %v563 = vpop.permute.xlu0 %562
        %564 = vrot.lane.b32.xlu0 %v295, 15
        %v565 = vpop.permute.xlu0 %564
        %566 = vrot.lane.b32.xlu0 %v297, 15
        %v567 = vpop.permute.xlu0 %566
        %vm568 = vcmp.lt.s32.totalorder %v472, 15
        %v569 = vsel %vm568, %v553, %v561
        %v570 = vsel %vm568, %v555, %v563
        %v571 = vsel %vm568, %v557, %v565
        %v572 = vsel %vm568, %v559, %v567
        %v573 = vsel %vm568, %v561, %v553
        %v574 = vsel %vm568, %v563, %v555
        %v575 = vsel %vm568, %v565, %v557
        %v576 = vsel %vm568, %v567, %v559
        %s577 = scalar_lea.vmem %s5, 4
        %v578 = vld [vmem:[%s577] sm:$0x3]
        %v580 = vperm.slane %v578, 0
        %v581 = vperm.slane %v578, 1
        %v584 = vmul.f32 %v573, %v580
        %v585 = vmul.f32 %v569, %v581
        %v586 = vmul.f32 %v574, %v580
        %v587 = vmul.f32 %v570, %v581
        %v588 = vmul.f32 %v575, %v580
        %v589 = vmul.f32 %v571, %v581
        %v590 = vmul.f32 %v576, %v580
        %v591 = vmul.f32 %v572, %v581
        %v592 = vpack.c.bf16 %v585, %v584
        %v593 = vpack.c.bf16 %v587, %v586
        %v594 = vpack.c.bf16 %v589, %v588
        %v595 = vpack.c.bf16 %v591, %v590
        %596 = vst [vmem:[#allocation2 + $0x40] sm:$0xff] %v592
        %597 = vst [vmem:[#allocation2 + $0x48] sm:$0xff] %v593
        %598 = vst [vmem:[#allocation2 + $0x50] sm:$0xff] %v594
        %599 = vst [vmem:[#allocation2 + $0x58] sm:$0xff] %v595
        %600 = vrot.lane.b32.xlu0 %v290, 1
        %v601 = vpop.permute.xlu0 %600
        %602 = vrot.lane.b32.xlu0 %v292, 1
        %v603 = vpop.permute.xlu0 %602
        %604 = vrot.lane.b32.xlu0 %v294, 1
        %v605 = vpop.permute.xlu0 %604
        %606 = vrot.lane.b32.xlu0 %v296, 1
        %v607 = vpop.permute.xlu0 %606
        %608 = vrot.lane.b32.xlu0 %v291, 1
        %v609 = vpop.permute.xlu0 %608
        %610 = vrot.lane.b32.xlu0 %v293, 1
        %v611 = vpop.permute.xlu0 %610
        %612 = vrot.lane.b32.xlu0 %v295, 1
        %v613 = vpop.permute.xlu0 %612
        %614 = vrot.lane.b32.xlu0 %v297, 1
        %v615 = vpop.permute.xlu0 %614
        %vm616 = vcmp.lt.s32.totalorder %v472, 1
        %v617 = vsel %vm616, %v601, %v609
        %v618 = vsel %vm616, %v603, %v611
        %v619 = vsel %vm616, %v605, %v613
        %v620 = vsel %vm616, %v607, %v615
        %v621 = vsel %vm616, %v609, %v601
        %v622 = vsel %vm616, %v611, %v603
        %v623 = vsel %vm616, %v613, %v605
        %v624 = vsel %vm616, %v615, %v607
        %s625 = scalar_lea.vmem %s5, 6
        %v626 = vld [vmem:[%s625] sm:$0x3]
        %v628 = vperm.slane %v626, 0
        %v629 = vperm.slane %v626, 1
        %v632 = vmul.f32 %v621, %v628
        %v633 = vmul.f32 %v617, %v629
        %v634 = vmul.f32 %v622, %v628
        %v635 = vmul.f32 %v618, %v629
        %v636 = vmul.f32 %v623, %v628
        %v637 = vmul.f32 %v619, %v629
        %v638 = vmul.f32 %v624, %v628
        %v639 = vmul.f32 %v620, %v629
        %v640 = vpack.c.bf16 %v633, %v632
        %v641 = vpack.c.bf16 %v635, %v634
        %v642 = vpack.c.bf16 %v637, %v636
        %v643 = vpack.c.bf16 %v639, %v638
        %644 = vst [vmem:[#allocation2 + $0x60] sm:$0xff] %v640
        %645 = vst [vmem:[#allocation2 + $0x68] sm:$0xff] %v641
        %646 = vst [vmem:[#allocation2 + $0x70] sm:$0xff] %v642
        %647 = vst [vmem:[#allocation2 + $0x78] sm:$0xff] %v643
        %648 = vrot.lane.b32.xlu0 %v290, 127
        %v649 = vpop.permute.xlu0 %648
        %650 = vrot.lane.b32.xlu0 %v292, 127
        %v651 = vpop.permute.xlu0 %650
        %652 = vrot.lane.b32.xlu0 %v294, 127
        %v653 = vpop.permute.xlu0 %652
        %654 = vrot.lane.b32.xlu0 %v296, 127
        %v655 = vpop.permute.xlu0 %654
        %656 = vrot.lane.b32.xlu0 %v291, 127
        %v657 = vpop.permute.xlu0 %656
        %658 = vrot.lane.b32.xlu0 %v293, 127
        %v659 = vpop.permute.xlu0 %658
        %660 = vrot.lane.b32.xlu0 %v295, 127
        %v661 = vpop.permute.xlu0 %660
        %662 = vrot.lane.b32.xlu0 %v297, 127
        %v663 = vpop.permute.xlu0 %662
        %vm664 = vcmp.lt.s32.totalorder %v472, 127
        %v665 = vsel %vm664, %v649, %v657
        %v666 = vsel %vm664, %v651, %v659
        %v667 = vsel %vm664, %v653, %v661
        %v668 = vsel %vm664, %v655, %v663
        %v669 = vsel %vm664, %v657, %v649
        %v670 = vsel %vm664, %v659, %v651
        %v671 = vsel %vm664, %v661, %v653
        %v672 = vsel %vm664, %v663, %v655
        %s673 = scalar_lea.vmem %s5, 8
        %v674 = vld [vmem:[%s673] sm:$0x3]
        %v676 = vperm.slane %v674, 0
        %v677 = vperm.slane %v674, 1
        %v680 = vmul.f32 %v665, %v676
        %v681 = vmul.f32 %v669, %v677
        %v682 = vmul.f32 %v666, %v676
        %v683 = vmul.f32 %v670, %v677
        %v684 = vmul.f32 %v667, %v676
        %v685 = vmul.f32 %v671, %v677
        %v686 = vmul.f32 %v668, %v676
        %v687 = vmul.f32 %v672, %v677
        %v688 = vpack.c.bf16 %v681, %v680
        %v689 = vpack.c.bf16 %v683, %v682
        %v690 = vpack.c.bf16 %v685, %v684
        %v691 = vpack.c.bf16 %v687, %v686
        %692 = vst [vmem:[#allocation2 + $0xa0] sm:$0xff] %v688
        %693 = vst [vmem:[#allocation2 + $0xa8] sm:$0xff] %v689
        %694 = vst [vmem:[#allocation2 + $0xb0] sm:$0xff] %v690
        %695 = vst [vmem:[#allocation2 + $0xb8] sm:$0xff] %v691
        %696 = vrot.lane.b32.xlu0 %v290, 113
        %v697 = vpop.permute.xlu0 %696
        %698 = vrot.lane.b32.xlu0 %v292, 113
        %v699 = vpop.permute.xlu0 %698
        %700 = vrot.lane.b32.xlu0 %v294, 113
        %v701 = vpop.permute.xlu0 %700
        %702 = vrot.lane.b32.xlu0 %v296, 113
        %v703 = vpop.permute.xlu0 %702
        %704 = vrot.lane.b32.xlu0 %v291, 113
        %v705 = vpop.permute.xlu0 %704
        %706 = vrot.lane.b32.xlu0 %v293, 113
        %v707 = vpop.permute.xlu0 %706
        %708 = vrot.lane.b32.xlu0 %v295, 113
        %v709 = vpop.permute.xlu0 %708
        %710 = vrot.lane.b32.xlu0 %v297, 113
        %v711 = vpop.permute.xlu0 %710
        %vm712 = vcmp.lt.s32.totalorder %v472, 113
        %v713 = vsel %vm712, %v697, %v705
        %v714 = vsel %vm712, %v699, %v707
        %v715 = vsel %vm712, %v701, %v709
        %v716 = vsel %vm712, %v703, %v711
        %v717 = vsel %vm712, %v705, %v697
        %v718 = vsel %vm712, %v707, %v699
        %v719 = vsel %vm712, %v709, %v701
        %v720 = vsel %vm712, %v711, %v703
        %s721 = scalar_lea.vmem %s5, 10
        %v722 = vld [vmem:[%s721] sm:$0x3]
        %v724 = vperm.slane %v722, 0
        %v725 = vperm.slane %v722, 1
        %v728 = vmul.f32 %v713, %v724
        %v729 = vmul.f32 %v717, %v725
        %v730 = vmul.f32 %v714, %v724
        %v731 = vmul.f32 %v718, %v725
        %v732 = vmul.f32 %v715, %v724
        %v733 = vmul.f32 %v719, %v725
        %v734 = vmul.f32 %v716, %v724
        %v735 = vmul.f32 %v720, %v725
        %v736 = vpack.c.bf16 %v729, %v728
        %v737 = vpack.c.bf16 %v731, %v730
        %v738 = vpack.c.bf16 %v733, %v732
        %v739 = vpack.c.bf16 %v735, %v734
        %740 = vst [vmem:[#allocation2 + $0xc0] sm:$0xff] %v736
        %741 = vst [vmem:[#allocation2 + $0xc8] sm:$0xff] %v737
        %742 = vst [vmem:[#allocation2 + $0xd0] sm:$0xff] %v738
        %743 = vst [vmem:[#allocation2 + $0xd8] sm:$0xff] %v739
        %744 = vrot.lane.b32.xlu0 %v290, 112
        %v745 = vpop.permute.xlu0 %744
        %746 = vrot.lane.b32.xlu0 %v292, 112
        %v747 = vpop.permute.xlu0 %746
        %748 = vrot.lane.b32.xlu0 %v294, 112
        %v749 = vpop.permute.xlu0 %748
        %750 = vrot.lane.b32.xlu0 %v296, 112
        %v751 = vpop.permute.xlu0 %750
        %752 = vrot.lane.b32.xlu0 %v291, 112
        %v753 = vpop.permute.xlu0 %752
        %754 = vrot.lane.b32.xlu0 %v293, 112
        %v755 = vpop.permute.xlu0 %754
        %756 = vrot.lane.b32.xlu0 %v295, 112
        %v757 = vpop.permute.xlu0 %756
        %758 = vrot.lane.b32.xlu0 %v297, 112
        %v759 = vpop.permute.xlu0 %758
        %vm760 = vcmp.lt.s32.totalorder %v472, 112
        %v761 = vsel %vm760, %v745, %v753
        %v762 = vsel %vm760, %v747, %v755
        %v763 = vsel %vm760, %v749, %v757
        %v764 = vsel %vm760, %v751, %v759
        %v765 = vsel %vm760, %v753, %v745
        %v766 = vsel %vm760, %v755, %v747
        %v767 = vsel %vm760, %v757, %v749
        %v768 = vsel %vm760, %v759, %v751
        %s769 = scalar_lea.vmem %s5, 12
        %v770 = vld [vmem:[%s769] sm:$0x3]
        %v772 = vperm.slane %v770, 0
        %v773 = vperm.slane %v770, 1
        %v776 = vmul.f32 %v761, %v772
        %v777 = vmul.f32 %v765, %v773
        %v778 = vmul.f32 %v762, %v772
        %v779 = vmul.f32 %v766, %v773
        %v780 = vmul.f32 %v763, %v772
        %v781 = vmul.f32 %v767, %v773
        %v782 = vmul.f32 %v764, %v772
        %v783 = vmul.f32 %v768, %v773
        %v784 = vpack.c.bf16 %v777, %v776
        %v785 = vpack.c.bf16 %v779, %v778
        %v786 = vpack.c.bf16 %v781, %v780
        %v787 = vpack.c.bf16 %v783, %v782
        %788 = vst [vmem:[#allocation2 + $0xe0] sm:$0xff] %v784
        %789 = vst [vmem:[#allocation2 + $0xe8] sm:$0xff] %v785
        %790 = vst [vmem:[#allocation2 + $0xf0] sm:$0xff] %v786
        %791 = vst [vmem:[#allocation2 + $0xf8] sm:$0xff] %v787
        %792 = vrot.lane.b32.xlu0 %v290, 111
        %v793 = vpop.permute.xlu0 %792
        %794 = vrot.lane.b32.xlu0 %v292, 111
        %v795 = vpop.permute.xlu0 %794
        %796 = vrot.lane.b32.xlu0 %v294, 111
        %v797 = vpop.permute.xlu0 %796
        %798 = vrot.lane.b32.xlu0 %v296, 111
        %v799 = vpop.permute.xlu0 %798
        %800 = vrot.lane.b32.xlu0 %v291, 111
        %v801 = vpop.permute.xlu0 %800
        %802 = vrot.lane.b32.xlu0 %v293, 111
        %v803 = vpop.permute.xlu0 %802
        %804 = vrot.lane.b32.xlu0 %v295, 111
        %v805 = vpop.permute.xlu0 %804
        %806 = vrot.lane.b32.xlu0 %v297, 111
        %v807 = vpop.permute.xlu0 %806
        %vm808 = vcmp.lt.s32.totalorder %v472, 111
        %v809 = vsel %vm808, %v793, %v801
        %v810 = vsel %vm808, %v795, %v803
        %v811 = vsel %vm808, %v797, %v805
        %v812 = vsel %vm808, %v799, %v807
        %v813 = vsel %vm808, %v801, %v793
        %v814 = vsel %vm808, %v803, %v795
        %v815 = vsel %vm808, %v805, %v797
        %v816 = vsel %vm808, %v807, %v799
        %s817 = scalar_lea.vmem %s5, 14
        %v818 = vld [vmem:[%s817] sm:$0x3]
        %v820 = vperm.slane %v818, 0
        %v821 = vperm.slane %v818, 1
        %v824 = vmul.f32 %v809, %v820
        %v825 = vmul.f32 %v813, %v821
        %v826 = vmul.f32 %v810, %v820
        %v827 = vmul.f32 %v814, %v821
        %v828 = vmul.f32 %v811, %v820
        %v829 = vmul.f32 %v815, %v821
        %v830 = vmul.f32 %v812, %v820
        %v831 = vmul.f32 %v816, %v821
        %v832 = vpack.c.bf16 %v825, %v824
        %v833 = vpack.c.bf16 %v827, %v826
        %v834 = vpack.c.bf16 %v829, %v828
        %v835 = vpack.c.bf16 %v831, %v830
        %836 = vst [vmem:[#allocation2 + $0x100] sm:$0xff] %v832
        %837 = vst [vmem:[#allocation2 + $0x108] sm:$0xff] %v833
        %838 = vst [vmem:[#allocation2 + $0x110] sm:$0xff] %v834
        %839 = vst [vmem:[#allocation2 + $0x118] sm:$0xff] %v835
        %v840 = vld [vmem:[%s1] sm:$0xff]
        %v841 = vld [vmem:[%s1 + $0x8] sm:$0xf]
        %v842 = vld [vmem:[%s1 + $0xc] sm:$0xff]
        %v843 = vld [vmem:[%s1 + $0x14] sm:$0xf]
        %v844 = vld [vmem:[%s1 + $0x18] sm:$0xff]
        %v845 = vld [vmem:[%s1 + $0x20] sm:$0xf]
        %v846 = vld [vmem:[%s1 + $0x24] sm:$0xff]
        %v847 = vld [vmem:[%s1 + $0x2c] sm:$0xf]
        %v848 = vld [vmem:[#allocation2] sm:$0xff]
        %v849 = vld [vmem:[#allocation2 + $0x8] sm:$0xff]
        %v850 = vld [vmem:[#allocation2 + $0x10] sm:$0xff]
        %v851 = vld [vmem:[#allocation2 + $0x18] sm:$0xff]
        %v852 = vld [vmem:[#allocation2 + $0x20] sm:$0xff]
        %v853 = vld [vmem:[#allocation2 + $0x28] sm:$0xff]
        %v854 = vld [vmem:[#allocation2 + $0x30] sm:$0xff]
        %v855 = vld [vmem:[#allocation2 + $0x38] sm:$0xff]
        %v856 = vld [vmem:[#allocation2 + $0x40] sm:$0xff]
        %v857 = vld [vmem:[#allocation2 + $0x48] sm:$0xff]
        %v858 = vld [vmem:[#allocation2 + $0x50] sm:$0xff]
        %v859 = vld [vmem:[#allocation2 + $0x58] sm:$0xff]
        %v860 = vld [vmem:[#allocation2 + $0x60] sm:$0xff]
        %v861 = vld [vmem:[#allocation2 + $0x68] sm:$0xff]
        %v862 = vld [vmem:[#allocation2 + $0x70] sm:$0xff]
        %v863 = vld [vmem:[#allocation2 + $0x78] sm:$0xff]
        %v864 = vld [vmem:[#allocation2 + $0x80] sm:$0xff]
        %v865 = vld [vmem:[#allocation2 + $0x88] sm:$0xff]
        %v866 = vld [vmem:[#allocation2 + $0x90] sm:$0xff]
        %v867 = vld [vmem:[#allocation2 + $0x98] sm:$0xff]
        %v868 = vld [vmem:[#allocation2 + $0xa0] sm:$0xff]
        %v869 = vld [vmem:[#allocation2 + $0xa8] sm:$0xff]
        %v870 = vld [vmem:[#allocation2 + $0xb0] sm:$0xff]
        %v871 = vld [vmem:[#allocation2 + $0xb8] sm:$0xff]
        %v872 = vld [vmem:[#allocation2 + $0xc0] sm:$0xff]
        %v873 = vld [vmem:[#allocation2 + $0xc8] sm:$0xff]
        %v874 = vld [vmem:[#allocation2 + $0xd0] sm:$0xff]
        %v875 = vld [vmem:[#allocation2 + $0xd8] sm:$0xff]
        %v876 = vld [vmem:[#allocation2 + $0xe0] sm:$0xff]
        %v877 = vld [vmem:[#allocation2 + $0xe8] sm:$0xff]
        %v878 = vld [vmem:[#allocation2 + $0xf0] sm:$0xff]
        %v879 = vld [vmem:[#allocation2 + $0xf8] sm:$0xff]
        %v880 = vld [vmem:[#allocation2 + $0x100] sm:$0xff]
        %v881 = vld [vmem:[#allocation2 + $0x108] sm:$0xff]
        %v882 = vld [vmem:[#allocation2 + $0x110] sm:$0xff]
        %v883 = vld [vmem:[#allocation2 + $0x118] sm:$0xff]
        %v884 = vld [vmem:[%s2] sm:$0xff]
        %v885 = vld [vmem:[%s2 + $0x8] sm:$0xff]
        %v886 = vld [vmem:[%s2 + $0x10] sm:$0xff]
        %v887 = vld [vmem:[%s2 + $0x18] sm:$0xff]
        %889 = vset.pattern.permute.xlu0 0
        %890 = vperm.xlu0 %889, %v884
        %v891 = vpop.permute.xlu0 %890
        %894 = vset.pattern.permute.xlu0 0
        %895 = vperm.xlu0 %894, %v885
        %v896 = vpop.permute.xlu0 %895
        %899 = vset.pattern.permute.xlu0 0
        %900 = vperm.xlu0 %899, %v886
        %v901 = vpop.permute.xlu0 %900
        %904 = vset.pattern.permute.xlu0 0
        %905 = vperm.xlu0 %904, %v887
        %v906 = vpop.permute.xlu0 %905
        %v916 = vunpack.c.l.b16 %v840
        %v917 = vunpack.c.h.b16 %v840
        %v918 = vunpack.c.l.b16 %v841
        %v919 = vunpack.c.l.b16 %v842
        %v920 = vunpack.c.h.b16 %v842
        %v921 = vunpack.c.l.b16 %v843
        %v922 = vunpack.c.l.b16 %v844
        %v923 = vunpack.c.h.b16 %v844
        %v924 = vunpack.c.l.b16 %v845
        %v925 = vunpack.c.l.b16 %v846
        %v926 = vunpack.c.h.b16 %v846
        %v927 = vunpack.c.l.b16 %v847
        %v928 = vpack.c.b16 %v919, %v916
        %v929 = vpack.c.b16 %v920, %v917
        %v930 = vpack.c.b16 %v921, %v918
        %v931 = vpack.c.b16 %v925, %v922
        %v932 = vpack.c.b16 %v926, %v923
        %v933 = vpack.c.b16 %v927, %v924
        %v974 = vunpack.c.l.b16 %v848
        %v975 = vunpack.c.h.b16 %v848
        %v976 = vunpack.c.l.b16 %v849
        %v977 = vunpack.c.h.b16 %v849
        %v978 = vunpack.c.l.b16 %v850
        %v979 = vunpack.c.h.b16 %v850
        %v980 = vunpack.c.l.b16 %v851
        %v981 = vunpack.c.h.b16 %v851
        %v982 = vunpack.c.l.b16 %v852
        %v983 = vunpack.c.h.b16 %v852
        %v984 = vunpack.c.l.b16 %v853
        %v985 = vunpack.c.h.b16 %v853
        %v986 = vunpack.c.l.b16 %v854
        %v987 = vunpack.c.h.b16 %v854
        %v988 = vunpack.c.l.b16 %v855
        %v989 = vunpack.c.h.b16 %v855
        %v990 = vunpack.c.l.b16 %v856
        %v991 = vunpack.c.h.b16 %v856
        %v992 = vunpack.c.l.b16 %v857
        %v993 = vunpack.c.h.b16 %v857
        %v994 = vunpack.c.l.b16 %v858
        %v995 = vunpack.c.h.b16 %v858
        %v996 = vunpack.c.l.b16 %v859
        %v997 = vunpack.c.h.b16 %v859
        %v998 = vunpack.c.l.b16 %v860
        %v999 = vunpack.c.h.b16 %v860
        %v1000 = vunpack.c.l.b16 %v861
        %v1001 = vunpack.c.h.b16 %v861
        %v1002 = vunpack.c.l.b16 %v862
        %v1003 = vunpack.c.h.b16 %v862
        %v1004 = vunpack.c.l.b16 %v863
        %v1005 = vunpack.c.h.b16 %v863
        %v1006 = vunpack.c.l.b16 %v864
        %v1007 = vunpack.c.h.b16 %v864
        %v1008 = vunpack.c.l.b16 %v865
        %v1009 = vunpack.c.h.b16 %v865
        %v1010 = vunpack.c.l.b16 %v866
        %v1011 = vunpack.c.h.b16 %v866
        %v1012 = vunpack.c.l.b16 %v867
        %v1013 = vunpack.c.h.b16 %v867
        %v1014 = vunpack.c.l.b16 %v868
        %v1015 = vunpack.c.h.b16 %v868
        %v1016 = vunpack.c.l.b16 %v869
        %v1017 = vunpack.c.h.b16 %v869
        %v1018 = vunpack.c.l.b16 %v870
        %v1019 = vunpack.c.h.b16 %v870
        %v1020 = vunpack.c.l.b16 %v871
        %v1021 = vunpack.c.h.b16 %v871
        %v1022 = vunpack.c.l.b16 %v872
        %v1023 = vunpack.c.h.b16 %v872
        %v1024 = vunpack.c.l.b16 %v873
        %v1025 = vunpack.c.h.b16 %v873
        %v1026 = vunpack.c.l.b16 %v874
        %v1027 = vunpack.c.h.b16 %v874
        %v1028 = vunpack.c.l.b16 %v875
        %v1029 = vunpack.c.h.b16 %v875
        %v1030 = vunpack.c.l.b16 %v876
        %v1031 = vunpack.c.h.b16 %v876
        %v1032 = vunpack.c.l.b16 %v877
        %v1033 = vunpack.c.h.b16 %v877
        %v1034 = vunpack.c.l.b16 %v878
        %v1035 = vunpack.c.h.b16 %v878
        %v1036 = vunpack.c.l.b16 %v879
        %v1037 = vunpack.c.h.b16 %v879
        %v1038 = vunpack.c.l.b16 %v880
        %v1039 = vunpack.c.h.b16 %v880
        %v1040 = vunpack.c.l.b16 %v881
        %v1041 = vunpack.c.h.b16 %v881
        %v1042 = vunpack.c.l.b16 %v882
        %v1043 = vunpack.c.h.b16 %v882
        %v1044 = vunpack.c.l.b16 %v883
        %v1045 = vunpack.c.h.b16 %v883
        %v1046 = vpack.c.b16 %v976, %v974
        %v1047 = vpack.c.b16 %v977, %v975
        %v1048 = vpack.c.b16 %v980, %v978
        %v1049 = vpack.c.b16 %v981, %v979
        %v1050 = vpack.c.b16 %v984, %v982
        %v1051 = vpack.c.b16 %v985, %v983
        %v1052 = vpack.c.b16 %v988, %v986
        %v1053 = vpack.c.b16 %v989, %v987
        %v1054 = vpack.c.b16 %v992, %v990
        %v1055 = vpack.c.b16 %v993, %v991
        %v1056 = vpack.c.b16 %v996, %v994
        %v1057 = vpack.c.b16 %v997, %v995
        %v1058 = vpack.c.b16 %v1000, %v998
        %v1059 = vpack.c.b16 %v1001, %v999
        %v1060 = vpack.c.b16 %v1004, %v1002
        %v1061 = vpack.c.b16 %v1005, %v1003
        %v1062 = vpack.c.b16 %v1008, %v1006
        %v1063 = vpack.c.b16 %v1009, %v1007
        %v1064 = vpack.c.b16 %v1012, %v1010
        %v1065 = vpack.c.b16 %v1013, %v1011
        %v1066 = vpack.c.b16 %v1016, %v1014
        %v1067 = vpack.c.b16 %v1017, %v1015
        %v1068 = vpack.c.b16 %v1020, %v1018
        %v1069 = vpack.c.b16 %v1021, %v1019
        %v1070 = vpack.c.b16 %v1024, %v1022
        %v1071 = vpack.c.b16 %v1025, %v1023
        %v1072 = vpack.c.b16 %v1028, %v1026
        %v1073 = vpack.c.b16 %v1029, %v1027
        %v1074 = vpack.c.b16 %v1032, %v1030
        %v1075 = vpack.c.b16 %v1033, %v1031
        %v1076 = vpack.c.b16 %v1036, %v1034
        %v1077 = vpack.c.b16 %v1037, %v1035
        %v1078 = vpack.c.b16 %v1040, %v1038
        %v1079 = vpack.c.b16 %v1041, %v1039
        %v1080 = vpack.c.b16 %v1044, %v1042
        %v1081 = vpack.c.b16 %v1045, %v1043
        %v1119 = vsel %vm329, %v930, 0
        %v1122 = vsel %vm329, %v933, 0
        %1124 = vmatpush.bf16.msra.mxu0 %v1060
        %1125 = vmatpush.bf16.msra.mxu0 %v1058
        %1126 = vmatpush.bf16.msra.mxu0 %v1056
        %1127 = vmatpush.bf16.msra.mxu0 %v1054
        %1128 = vmatpush.bf16.msra.mxu0 %v1052
        %1129 = vmatpush.bf16.msra.mxu0 %v1050
        %1130 = vmatpush.bf16.msra.mxu0 %v1048
        %1131 = vmatpush.bf16.msra.mxu0 %v1046
        %1132 = vmatmul.bf16.gmra.mxu0 %v928
        %v1133 = vpop.f32.mrf.mxu0
        %v1134 = vadd.f32 %v891, %v1133
        %v1135 = vpop.f32.mrf.mxu0
        %v1136 = vadd.f32 %v896, %v1135
        %1137 = vmatmul.bf16.gmra.mxu0 %v931
        %v1138 = vpop.f32.mrf.mxu0
        %v1139 = vadd.f32 %v901, %v1138
        %v1140 = vpop.f32.mrf.mxu0
        %v1141 = vadd.f32 %v906, %v1140
        %1142 = vdwg.mxu0
        %1143 = vmatpush.bf16.msra.mxu0 %v1076
        %1144 = vmatpush.bf16.msra.mxu0 %v1074
        %1145 = vmatpush.bf16.msra.mxu0 %v1072
        %1146 = vmatpush.bf16.msra.mxu0 %v1070
        %1147 = vmatpush.bf16.msra.mxu0 %v1068
        %1148 = vmatpush.bf16.msra.mxu0 %v1066
        %1149 = vmatpush.bf16.msra.mxu0 %v1064
        %1150 = vmatpush.bf16.msra.mxu0 %v1062
        %1151 = vmatmul.bf16.gmra.mxu0 %v929
        %v1152 = vpop.f32.mrf.mxu0
        %v1153 = vadd.f32 %v1134, %v1152
        %v1154 = vpop.f32.mrf.mxu0
        %v1155 = vadd.f32 %v1136, %v1154
        %1156 = vmatmul.bf16.gmra.mxu0 %v932
        %v1157 = vpop.f32.mrf.mxu0
        %v1158 = vadd.f32 %v1139, %v1157
        %v1159 = vpop.f32.mrf.mxu0
        %v1160 = vadd.f32 %v1141, %v1159
        %1161 = vdwg.mxu0
        %1162 = vmatpush.bf16.msra.mxu0 0
        %1163 = vmatpush.bf16.msra.mxu0 0
        %1164 = vmatpush.bf16.msra.mxu0 0
        %1165 = vmatpush.bf16.msra.mxu0 0
        %1166 = vmatpush.bf16.msra.mxu0 0
        %1167 = vmatpush.bf16.msra.mxu0 0
        %1168 = vmatpush.bf16.msra.mxu0 %v1080
        %1169 = vmatpush.bf16.msra.mxu0 %v1078
        %1170 = vmatmul.bf16.gmra.mxu0 %v1119
        %v1171 = vpop.f32.mrf.mxu0
        %v1172 = vadd.f32 %v1153, %v1171
        %v1173 = vpop.f32.mrf.mxu0
        %v1174 = vadd.f32 %v1155, %v1173
        %1175 = vmatmul.bf16.gmra.mxu0 %v1122
        %v1176 = vpop.f32.mrf.mxu0
        %v1177 = vadd.f32 %v1158, %v1176
        %v1178 = vpop.f32.mrf.mxu0
        %v1179 = vadd.f32 %v1160, %v1178
        %1180 = vdwg.mxu0
        %1181 = vmatpush.bf16.msra.mxu0 %v1061
        %1182 = vmatpush.bf16.msra.mxu0 %v1059
        %1183 = vmatpush.bf16.msra.mxu0 %v1057
        %1184 = vmatpush.bf16.msra.mxu0 %v1055
        %1185 = vmatpush.bf16.msra.mxu0 %v1053
        %1186 = vmatpush.bf16.msra.mxu0 %v1051
        %1187 = vmatpush.bf16.msra.mxu0 %v1049
        %1188 = vmatpush.bf16.msra.mxu0 %v1047
        %1189 = vmatmul.bf16.gmra.mxu0 %v928
        %v1190 = vpop.f32.mrf.mxu0
        %v1191 = vadd.f32 %v891, %v1190
        %v1192 = vpop.f32.mrf.mxu0
        %v1193 = vadd.f32 %v896, %v1192
        %1194 = vmatmul.bf16.gmra.mxu0 %v931
        %v1195 = vpop.f32.mrf.mxu0
        %v1196 = vadd.f32 %v901, %v1195
        %v1197 = vpop.f32.mrf.mxu0
        %v1198 = vadd.f32 %v906, %v1197
        %1199 = vdwg.mxu0
        %1200 = vmatpush.bf16.msra.mxu0 %v1077
        %1201 = vmatpush.bf16.msra.mxu0 %v1075
        %1202 = vmatpush.bf16.msra.mxu0 %v1073
        %1203 = vmatpush.bf16.msra.mxu0 %v1071
        %1204 = vmatpush.bf16.msra.mxu0 %v1069
        %1205 = vmatpush.bf16.msra.mxu0 %v1067
        %1206 = vmatpush.bf16.msra.mxu0 %v1065
        %1207 = vmatpush.bf16.msra.mxu0 %v1063
        %1208 = vmatmul.bf16.gmra.mxu0 %v929
        %v1209 = vpop.f32.mrf.mxu0
        %v1210 = vadd.f32 %v1191, %v1209
        %v1211 = vpop.f32.mrf.mxu0
        %v1212 = vadd.f32 %v1193, %v1211
        %1213 = vmatmul.bf16.gmra.mxu0 %v932
        %v1214 = vpop.f32.mrf.mxu0
        %v1215 = vadd.f32 %v1196, %v1214
        %v1216 = vpop.f32.mrf.mxu0
        %v1217 = vadd.f32 %v1198, %v1216
        %1218 = vdwg.mxu0
        %1219 = vmatpush.bf16.msra.mxu0 0
        %1220 = vmatpush.bf16.msra.mxu0 0
        %1221 = vmatpush.bf16.msra.mxu0 0
        %1222 = vmatpush.bf16.msra.mxu0 0
        %1223 = vmatpush.bf16.msra.mxu0 0
        %1224 = vmatpush.bf16.msra.mxu0 0
        %1225 = vmatpush.bf16.msra.mxu0 %v1081
        %1226 = vmatpush.bf16.msra.mxu0 %v1079
        %1227 = vmatmul.bf16.gmra.mxu0 %v1119
        %v1228 = vpop.f32.mrf.mxu0
        %v1229 = vadd.f32 %v1210, %v1228
        %v1230 = vpop.f32.mrf.mxu0
        %v1231 = vadd.f32 %v1212, %v1230
        %1232 = vmatmul.bf16.gmra.mxu0 %v1122
        %v1233 = vpop.f32.mrf.mxu0
        %v1234 = vadd.f32 %v1215, %v1233
        %v1235 = vpop.f32.mrf.mxu0
        %v1236 = vadd.f32 %v1217, %v1235
        %1237 = vdwg.mxu0
        %1239 = vset.pattern.permute.xlu0 0
        %1240 = vperm.xlu0 %1239, %v401
        %v1241 = vpop.permute.xlu0 %1240
        %1244 = vset.pattern.permute.xlu0 0
        %1245 = vperm.xlu0 %1244, %v416
        %v1246 = vpop.permute.xlu0 %1245
        %1249 = vset.pattern.permute.xlu0 0
        %1250 = vperm.xlu0 %1249, %v431
        %v1251 = vpop.permute.xlu0 %1250
        %1254 = vset.pattern.permute.xlu0 0
        %1255 = vperm.xlu0 %1254, %v446
        %v1256 = vpop.permute.xlu0 %1255
        %v1258 = vmul.f32 %v1241, %v290
        %v1259 = vmul.f32 %v1241, %v291
        %v1260 = vmul.f32 %v1246, %v292
        %v1261 = vmul.f32 %v1246, %v293
        %v1262 = vmul.f32 %v1251, %v294
        %v1263 = vmul.f32 %v1251, %v295
        %v1264 = vmul.f32 %v1256, %v296
        %v1265 = vmul.f32 %v1256, %v297
        %v1266 = vadd.f32 %v1172, %v1258
        %v1267 = vadd.f32 %v1229, %v1259
        %v1268 = vadd.f32 %v1174, %v1260
        %v1269 = vadd.f32 %v1231, %v1261
        %v1270 = vadd.f32 %v1177, %v1262
        %v1271 = vadd.f32 %v1234, %v1263
        %v1272 = vadd.f32 %v1179, %v1264
        %v1273 = vadd.f32 %v1236, %v1265
        %v1274 = vmax.f32 %v1266, 0.0
        %v1275 = vmax.f32 %v1267, 0.0
        %v1276 = vmax.f32 %v1268, 0.0
        %v1277 = vmax.f32 %v1269, 0.0
        %v1278 = vmax.f32 %v1270, 0.0
        %v1279 = vmax.f32 %v1271, 0.0
        %v1280 = vmax.f32 %v1272, 0.0
        %v1281 = vmax.f32 %v1273, 0.0
        %1282 = vst [vmem:[%s288] sm:$0xff] %v1274
        %1283 = vst [vmem:[%s288 + $0x8] sm:$0xff] %v1275
        %1284 = vst [vmem:[%s288 + $0x10] sm:$0xff] %v1276
        %1285 = vst [vmem:[%s288 + $0x18] sm:$0xff] %v1277
        %1286 = vst [vmem:[%s288 + $0x20] sm:$0xff] %v1278
        %1287 = vst [vmem:[%s288 + $0x28] sm:$0xff] %v1279
        %1288 = vst [vmem:[%s288 + $0x30] sm:$0xff] %v1280
        %1289 = vst [vmem:[%s288 + $0x38] sm:$0xff] %v1281
        %s1290 = sand.u32 %s163, 1
        %s1291 = scalar_lea.sflag [#allocation5], %s1290
        %s1292 = sand.u32 %s163, 1
        %s1293 = smul.addr %s1292, 64
        %s1294 = scalar_lea.vmem [#allocation8], %s1293
        // Predicated region
        $region53: #{tpu_custom_call.1} parent=43 // pred_check
          %p1295 = pneg %p173
        $region54: #{tpu_custom_call.1} parent=43 // pred_check_branch
          %1297 = sbr.rel (%p1295) target = $region56
        $region55: #{tpu_custom_call.1} parent=43 // pred_region
          %1299 = vsyncadd %s1291, 0
          %s1300 = smul.addr %s24, 8
          %s1301 = smul.addr %s1300, 8
          %s1302 = scalar_lea.hbm %s6, %s1301
          %s1303 = sshll.u32 %s1294, 4
          %s1304 = int_to_ptr.vmem [resolvable:$true] %s1303
          %s1305 = sshll.u32 %s1302, 4
          %s1306 = int_to_ptr.hbm [resolvable:$true] %s1305
          %1311 = dma.vmem_to_hbm [thread:$0]  %s1304, 1024, %s1306, %s1291, 256, 256, 16
        $region56: #{tpu_custom_call.1} parent=43 // pred_fallthru
          _
      $region44: #{tpu_custom_call.1} parent=5 // pred_fallthru
        _
      %p1312 = scmp.le.s32.totalorder 2, %s19
      // Predicated region
      $region57: #{tpu_custom_call.1} parent=5 // pred_check
        %p1313 = pneg %p1312
      $region58: #{tpu_custom_call.1} parent=5 // pred_check_branch
        %1315 = sbr.rel (%p1313) target = $region60
      $region59: #{tpu_custom_call.1} parent=5 // pred_region
        %s1316 = ssub.s32 %s19, 2
        // Predicated region
        $region61: #{tpu_custom_call.1} parent=59 // pred_check
          %p1317 = pneg %p179
        $region62: #{tpu_custom_call.1} parent=59 // pred_check_branch
          %1319 = sbr.rel (%p1317) target = $region64
        $region63: #{tpu_custom_call.1} parent=59 // pred_region
          %s1320 = sand.u32 %s164, 1
          %s1321 = scalar_lea.sflag [#allocation5], %s1320
          %s1322 = sand.u32 %s164, 1
          %s1323 = smul.addr %s1322, 64
          %s1324 = scalar_lea.vmem [#allocation8], %s1323
          %1326 = dma.done %s1321, 1024
        $region64: #{tpu_custom_call.1} parent=59 // pred_fallthru
          _
      $region60: #{tpu_custom_call.1} parent=5 // pred_fallthru
        _
    $region6: #{tpu_custom_call.1} parent=1 // loop_footer
      %s23 = sadd.s32 1, %s19
    $region7: #{tpu_custom_call.1} parent=1 // loop_footer_branch
      %18 = sbr.rel target = $region3
    $region8: #{tpu_custom_call.1} parent=1 // loop_exit
      _
    %1327 = vsyncpa [#allocation4], 1
    %s1328 = scalar_lea.sflag [#allocation4], 1
    %1329 = vsyncpa %s1328, 1
    %1330 = vsyncpa [#allocation7], 1
    %1331 = vsyncpa [#allocation5], 1
    %s1332 = scalar_lea.sflag [#allocation5], 1
    %1333 = vsyncpa %s1332, 1

</llo_original>
